<compile_context>
chip_gen: v7x
topology: tpu7x:2x2x1
jax: 0.10.0
libtpu: 0.0.40
codegen_flags: <defaults>
</compile_context>

<pallas_src>
import functools
import math

import jax
import jax.numpy as jnp
from jax import lax
from jax.experimental import pallas as pl
from jax.experimental.pallas import tpu as pltpu


def _round_up(n, m):
    return ((n + m - 1) // m) * m


def _gelu_tanh(x):
    # tanh-approximate GELU: the transcendental goes to the EUP bundle slot (free
    # filler) instead of the VALU erf polynomial.
    c = math.sqrt(2.0 / math.pi)
    return 0.5 * x * (1.0 + jnp.tanh(c * (x + 0.044715 * x * x * x)))


def _gelu_erf(x):
    # PyTorch nn.GELU default (approximate='none'): 0.5*x*(1+erf(x/sqrt(2)))
    return 0.5 * x * (1.0 + lax.erf(x * (1.0 / math.sqrt(2.0))))


def _audionet_kernel(gelu, x_ref, w1_ref, b1_ref, w2_ref, b2_ref, w3_ref, b3_ref,
                     o_ref):
    # x tile arrives already in bf16 (cast done once in the wrapper).
    x = x_ref[...]

    # layer 1: (tb, dim) @ (dim, 256); bf16 inputs, f32 accumulate; bias+GELU in f32.
    h1 = jnp.dot(x, w1_ref[...], preferred_element_type=jnp.float32) + b1_ref[...]
    h1 = gelu(h1)
    # dropout(p=0.1): identity in eval mode

    # layer 2: (tb, 256) @ (256, 128).  N=128 half-fills the v6e/v7x 256-wide MXU;
    # irrelevant here since the kernel is DMA/VALU bound, not MXU bound.
    h2 = jnp.dot(h1.astype(jnp.bfloat16), w2_ref[...],
                 preferred_element_type=jnp.float32) + b2_ref[...]
    h2 = gelu(h2)
    # dropout(p=0.1): identity in eval mode

    # layer 3: contract (1,128) with (tb,128) over the feature axis -> (1, tb),
    # landing directly in the lane-dense row layout of the output block (no
    # lane-sparse (tb,1) masked stores).  This GEMV is ~0.1% of the FLOPs.
    out = lax.dot_general(w3_ref[...], h2, (((1,), (1,)), ((), ())),
                          preferred_element_type=jnp.float32)
    o_ref[...] = out + b3_ref[0, 0]            # b3 is a scalar read from SMEM


def audionet_forward(x, params, *, tb=2048, approximate_gelu=True):
    """x: (B, dim) float32 -> (B, 1) float32.

    params: w1 (dim,256), w2 (256,128) stored (in,out); w3 (1,128) (PyTorch layout);
            b1 (1,256), b2 (1,128), b3 (1,1); all float32.
    """
    B, dim = x.shape
    w1 = params["w1"].astype(jnp.bfloat16)
    w2 = params["w2"].astype(jnp.bfloat16)
    w3 = params["w3"]                        # (1, 128) f32 (tiny; keep full precision)
    b1, b2, b3 = params["b1"], params["b2"], params["b3"]

    # Stream x as bf16: halves the dominant per-row HBM traffic (weights are resident)
    # and halves any pad copy below.
    x = x.astype(jnp.bfloat16)

    # --- batch-tile selection: always a multiple of 128 (lane-dense output tiles) ---
    B128 = _round_up(max(B, 1), 128)
    tb = _round_up(tb, 128)
    # v7x has 2 TensorCores; the "parallel" grid axis only shards with >=2 grid
    # steps.  Cap tb at ceil(B/2) (rounded to 128) once the batch spans more than
    # one 128-row tile.  No effect on v5e/v6e (1 TC).
    if B128 >= 2 * 128:
        tb = min(tb, _round_up(-(-B128 // 2), 128))
    tb = max(128, min(tb, B128))

    B_pad = _round_up(B, tb)
    if B_pad != B:
        x = jnp.pad(x, ((0, B_pad - B), (0, 0)))   # pad after the bf16 cast
    num_tiles = B_pad // tb

    gelu = _gelu_tanh if approximate_gelu else _gelu_erf
    kernel = functools.partial(_audionet_kernel, gelu)

    full = lambda i: (0, 0)   # weights/biases: grid-invariant, fully resident blocks

    cost = pl.CostEstimate(
        flops=2 * B_pad * (dim * 256 + 256 * 128 + 128),
        transcendentals=B_pad * (256 + 128),
        bytes_accessed=(B_pad * dim * 2                   # x (bf16)
                        + (dim * 256 + 256 * 128) * 2     # w1, w2 (bf16)
                        + (256 + 128 + 128 + 1) * 4       # biases + w3 (f32)
                        + B_pad * 4),                     # output (f32)
    )

    out = pl.pallas_call(
        kernel,
        out_shape=jax.ShapeDtypeStruct((1, B_pad), jnp.float32),
        grid_spec=pltpu.PrefetchScalarGridSpec(
            num_scalar_prefetch=0,
            grid=(num_tiles,),
            in_specs=[
                pl.BlockSpec((tb, dim), lambda i: (i, 0)),          # x batch tile (bf16)
                # Grid-invariant operands (constant index_map -> DMA'd once).
                pl.BlockSpec(w1.shape, full),                        # w1 (bf16)
                pl.BlockSpec(b1.shape, full),                        # b1 (f32)
                pl.BlockSpec(w2.shape, full),                        # w2 (bf16)
                pl.BlockSpec(b2.shape, full),                        # b2 (f32)
                pl.BlockSpec(w3.shape, full),                        # w3 (f32)
                pl.BlockSpec(memory_space=pltpu.MemorySpace.SMEM),   # b3 scalar
            ],
            # Lane-dense output: each grid step writes one (1, tb) row of (1, B_pad).
            out_specs=pl.BlockSpec((1, tb), lambda i: (0, i)),
        ),
        compiler_params=pltpu.CompilerParams(
            dimension_semantics=("parallel",),   # batch tiles shard across TCs (v7x)
        ),
        cost_estimate=cost,
    )(x, w1, b1, w2, b2, w3, b3)

    return out[0, :B].reshape(B, 1)


def init_params(key, dim=512):
    """Deterministic init mirroring nn.Linear; w1/w2 stored (in,out), w3 as (1,128)."""
    ks = jax.random.split(key, 6)

    def linear(kw, kb, fan_in, fan_out, store_transposed):
        bound = 1.0 / math.sqrt(fan_in)
        if store_transposed:      # (in, out) so y = x @ W
            w = jax.random.uniform(kw, (fan_in, fan_out), jnp.float32, -bound, bound)
        else:                     # PyTorch layout (out, in)
            w = jax.random.uniform(kw, (fan_out, fan_in), jnp.float32, -bound, bound)
        b = jax.random.uniform(kb, (1, fan_out), jnp.float32, -bound, bound)
        return w, b

    w1, b1 = linear(ks[0], ks[1], dim, 256, True)
    w2, b2 = linear(ks[2], ks[3], 256, 128, True)
    w3, b3 = linear(ks[4], ks[5], 128, 1, False)    # (1, 128), (1, 1)
    return {"w1": w1, "b1": b1, "w2": w2, "b2": b2, "w3": w3, "b3": b3}


def audionet_ref(x, p):
    """Pure-JAX reference using the same bf16-input / tanh-GELU recipe as the kernel."""
    h = _gelu_tanh(jnp.dot(x.astype(jnp.bfloat16), p["w1"].astype(jnp.bfloat16),
                           preferred_element_type=jnp.float32) + p["b1"])
    h = _gelu_tanh(jnp.dot(h.astype(jnp.bfloat16), p["w2"].astype(jnp.bfloat16),
                           preferred_element_type=jnp.float32) + p["b2"])
    return jnp.dot(h, p["w3"].T, preferred_element_type=jnp.float32) + p["b3"]


def audionet_ref_f32(x, p):
    """Full-f32 exact-erf reference (matches the PyTorch module in eval mode)."""
    h = _gelu_erf(x @ p["w1"] + p["b1"])
    h = _gelu_erf(h @ p["w2"] + p["b2"])
    return h @ p["w3"].T + p["b3"]


if __name__ == "__main__":
    dim = 512      # AudioNet's default embedding dim

    key = jax.random.PRNGKey(0)
    kx1, kx2, kp = jax.random.split(key, 3)
    params = init_params(kp, dim)

    # Case 1: small batch, not a multiple of the tile (single-tile path + padding).
    x_small = jax.random.normal(kx1, (37, dim), jnp.float32)
    out_small = jax.block_until_ready(audionet_forward(x_small, params))
    assert out_small.shape == (37, 1)

    # Case 2: batch large enough to force >= 2 grid tiles (v7x dual-TC path) + padding.
    x_multi = jax.random.normal(kx2, (259, dim), jnp.float32)
    out_multi = jax.block_until_ready(audionet_forward(x_multi, params))
    assert out_multi.shape == (259, 1)

    for xx, oo in ((x_small, out_small), (x_multi, out_multi)):
        ref = audionet_ref(xx, params)          # same bf16 + tanh-GELU recipe
        assert jnp.allclose(oo, ref, atol=2e-3, rtol=2e-3), \
            float(jnp.max(jnp.abs(oo - ref)))
        ref32 = audionet_ref_f32(xx, params)    # f32 exact-erf (PyTorch semantics)
        assert jnp.allclose(oo, ref32, atol=8e-2, rtol=5e-2), \
            float(jnp.max(jnp.abs(oo - ref32)))

    print("KERNEL_OK")
</pallas_src>

<mosaic_0001>
module attributes {stable_mosaic.version = 11 : i64} {
  func.func @_audionet_kernel(%arg0: i32, %arg1: memref<128x512xbf16, #tpu.memory_space<vmem>>, %arg2: memref<512x256xbf16, #tpu.memory_space<vmem>>, %arg3: memref<1x256xf32, #tpu.memory_space<vmem>>, %arg4: memref<256x128xbf16, #tpu.memory_space<vmem>>, %arg5: memref<1x128xf32, #tpu.memory_space<vmem>>, %arg6: memref<1x128xf32, #tpu.memory_space<vmem>>, %arg7: memref<1x1xf32, #tpu.memory_space<smem>>, %arg8: memref<1x128xf32, #tpu.memory_space<vmem>>) attributes {dimension_semantics = [#tpu.dimension_semantics<parallel>], iteration_bounds = array<i64: 1>, scalar_prefetch = 0 : i64, scratch_operands = 0 : i64, tpu.core_type = #tpu.core_type<tc>, window_params = [{transform_indices = @transform_0, window_bounds = array<i64: 128, 512>}, {pipeline_mode = #tpu.pipeline_mode<synchronous>, transform_indices = @transform_1, window_bounds = array<i64: 512, 256>}, {pipeline_mode = #tpu.pipeline_mode<synchronous>, transform_indices = @transform_2, window_bounds = array<i64: 1, 256>}, {pipeline_mode = #tpu.pipeline_mode<synchronous>, transform_indices = @transform_3, window_bounds = array<i64: 256, 128>}, {pipeline_mode = #tpu.pipeline_mode<synchronous>, transform_indices = @transform_4, window_bounds = array<i64: 1, 128>}, {pipeline_mode = #tpu.pipeline_mode<synchronous>, transform_indices = @transform_5, window_bounds = array<i64: 1, 128>}, {transform_indices = @transform_6, window_bounds = array<i64: 1, 1>}, {transform_indices = @transform_7, window_bounds = array<i64: 1, 128>}]} {
    %c0 = arith.constant 0 : index
    %c0_0 = arith.constant 0 : index
    %0 = vector.load %arg1[%c0, %c0_0] : memref<128x512xbf16, #tpu.memory_space<vmem>>, vector<128x512xbf16>
    %c0_1 = arith.constant 0 : index
    %c0_2 = arith.constant 0 : index
    %1 = vector.load %arg2[%c0_1, %c0_2] : memref<512x256xbf16, #tpu.memory_space<vmem>>, vector<512x256xbf16>
    %cst = arith.constant dense<0.000000e+00> : vector<128x256xf32>
    %2 = tpu.matmul %0, %1, %cst {dimension_numbers = #tpu.dot_dimension_numbers<[1], [0], [0], [1], [0, 0, 1, 1], [], []>} : vector<128x512xbf16>, vector<512x256xbf16>, vector<128x256xf32> -> vector<128x256xf32>
    %c0_3 = arith.constant 0 : index
    %c0_4 = arith.constant 0 : index
    %3 = vector.load %arg3[%c0_3, %c0_4] : memref<1x256xf32, #tpu.memory_space<vmem>>, vector<1x256xf32>
    %4 = vector.broadcast %3 : vector<1x256xf32> to vector<128x256xf32>
    %5 = arith.addf %2, %4 : vector<128x256xf32>
    %cst_5 = arith.constant 5.000000e-01 : f32
    %6 = vector.broadcast %cst_5 : f32 to vector<128x256xf32>
    %7 = arith.mulf %6, %5 : vector<128x256xf32>
    %cst_6 = arith.constant 4.471500e-02 : f32
    %8 = vector.broadcast %cst_6 : f32 to vector<128x256xf32>
    %9 = arith.mulf %8, %5 : vector<128x256xf32>
    %10 = arith.mulf %9, %5 : vector<128x256xf32>
    %11 = arith.mulf %10, %5 : vector<128x256xf32>
    %12 = arith.addf %5, %11 : vector<128x256xf32>
    %cst_7 = arith.constant 0.797884583 : f32
    %13 = vector.broadcast %cst_7 : f32 to vector<128x256xf32>
    %14 = arith.mulf %13, %12 : vector<128x256xf32>
    %15 = math.tanh %14 : vector<128x256xf32>
    %cst_8 = arith.constant 1.000000e+00 : f32
    %16 = vector.broadcast %cst_8 : f32 to vector<128x256xf32>
    %17 = arith.addf %16, %15 : vector<128x256xf32>
    %18 = arith.mulf %7, %17 : vector<128x256xf32>
    %19 = arith.truncf %18 : vector<128x256xf32> to vector<128x256xbf16>
    %c0_9 = arith.constant 0 : index
    %c0_10 = arith.constant 0 : index
    %20 = vector.load %arg4[%c0_9, %c0_10] : memref<256x128xbf16, #tpu.memory_space<vmem>>, vector<256x128xbf16>
    %cst_11 = arith.constant dense<0.000000e+00> : vector<128x128xf32>
    %21 = tpu.matmul %19, %20, %cst_11 {dimension_numbers = #tpu.dot_dimension_numbers<[1], [0], [0], [1], [0, 0, 1, 1], [], []>} : vector<128x256xbf16>, vector<256x128xbf16>, vector<128x128xf32> -> vector<128x128xf32>
    %c0_12 = arith.constant 0 : index
    %c0_13 = arith.constant 0 : index
    %22 = vector.load %arg5[%c0_12, %c0_13] : memref<1x128xf32, #tpu.memory_space<vmem>>, vector<1x128xf32>
    %23 = vector.broadcast %22 : vector<1x128xf32> to vector<128x128xf32>
    %24 = arith.addf %21, %23 : vector<128x128xf32>
    %cst_14 = arith.constant 5.000000e-01 : f32
    %25 = vector.broadcast %cst_14 : f32 to vector<128x128xf32>
    %26 = arith.mulf %25, %24 : vector<128x128xf32>
    %cst_15 = arith.constant 4.471500e-02 : f32
    %27 = vector.broadcast %cst_15 : f32 to vector<128x128xf32>
    %28 = arith.mulf %27, %24 : vector<128x128xf32>
    %29 = arith.mulf %28, %24 : vector<128x128xf32>
    %30 = arith.mulf %29, %24 : vector<128x128xf32>
    %31 = arith.addf %24, %30 : vector<128x128xf32>
    %cst_16 = arith.constant 0.797884583 : f32
    %32 = vector.broadcast %cst_16 : f32 to vector<128x128xf32>
    %33 = arith.mulf %32, %31 : vector<128x128xf32>
    %34 = math.tanh %33 : vector<128x128xf32>
    %cst_17 = arith.constant 1.000000e+00 : f32
    %35 = vector.broadcast %cst_17 : f32 to vector<128x128xf32>
    %36 = arith.addf %35, %34 : vector<128x128xf32>
    %37 = arith.mulf %26, %36 : vector<128x128xf32>
    %c0_18 = arith.constant 0 : index
    %c0_19 = arith.constant 0 : index
    %38 = vector.load %arg6[%c0_18, %c0_19] : memref<1x128xf32, #tpu.memory_space<vmem>>, vector<1x128xf32>
    %cst_20 = arith.constant dense<0.000000e+00> : vector<1x128xf32>
    %39 = tpu.matmul %38, %37, %cst_20 {dimension_numbers = #tpu.dot_dimension_numbers<[1], [1], [0], [0], [0, 0, 1, 0], [], []>} : vector<1x128xf32>, vector<128x128xf32>, vector<1x128xf32> -> vector<1x128xf32>
    %c0_21 = arith.constant 0 : index
    %c0_22 = arith.constant 0 : index
    %40 = memref.load %arg7[%c0_21, %c0_22] : memref<1x1xf32, #tpu.memory_space<smem>>
    %41 = vector.broadcast %40 : f32 to vector<1x128xf32>
    %42 = arith.addf %39, %41 : vector<1x128xf32>
    %c0_23 = arith.constant 0 : index
    %c0_24 = arith.constant 0 : index
    %43 = vector.load %arg8[%c0_23, %c0_24] : memref<1x128xf32, #tpu.memory_space<vmem>>, vector<1x128xf32>
    tpu.vector_store %arg8[%c0_23, %c0_24], %42 {strides = array<i32>} : memref<1x128xf32, #tpu.memory_space<vmem>>, vector<1x128xf32>,
    return
  }
  func.func @transform_0(%arg0: i32) -> (i32, i32) {
    %c0_i32 = arith.constant 0 : i32
    %c0_i32_0 = arith.constant 0 : i32
    return %arg0, %c0_i32 : i32, i32
  }
  func.func @transform_1(%arg0: i32) -> (i32, i32) {
    %c0_i32 = arith.constant 0 : i32
    %c0_i32_0 = arith.constant 0 : i32
    %c0_i32_1 = arith.constant 0 : i32
    return %c0_i32, %c0_i32_0 : i32, i32
  }
  func.func @transform_2(%arg0: i32) -> (i32, i32) {
    %c0_i32 = arith.constant 0 : i32
    %c0_i32_0 = arith.constant 0 : i32
    %c0_i32_1 = arith.constant 0 : i32
    return %c0_i32, %c0_i32_0 : i32, i32
  }
  func.func @transform_3(%arg0: i32) -> (i32, i32) {
    %c0_i32 = arith.constant 0 : i32
    %c0_i32_0 = arith.constant 0 : i32
    %c0_i32_1 = arith.constant 0 : i32
    return %c0_i32, %c0_i32_0 : i32, i32
  }
  func.func @transform_4(%arg0: i32) -> (i32, i32) {
    %c0_i32 = arith.constant 0 : i32
    %c0_i32_0 = arith.constant 0 : i32
    %c0_i32_1 = arith.constant 0 : i32
    return %c0_i32, %c0_i32_0 : i32, i32
  }
  func.func @transform_5(%arg0: i32) -> (i32, i32) {
    %c0_i32 = arith.constant 0 : i32
    %c0_i32_0 = arith.constant 0 : i32
    %c0_i32_1 = arith.constant 0 : i32
    return %c0_i32, %c0_i32_0 : i32, i32
  }
  func.func @transform_6(%arg0: i32) -> (i32, i32) {
    %c0_i32 = arith.constant 0 : i32
    %c0_i32_0 = arith.constant 0 : i32
    %c0_i32_1 = arith.constant 0 : i32
    return %c0_i32, %c0_i32_0 : i32, i32
  }
  func.func @transform_7(%arg0: i32) -> (i32, i32) {
    %c0_i32 = arith.constant 0 : i32
    %c0_i32_0 = arith.constant 0 : i32
    return %c0_i32, %arg0 : i32, i32
  }
}

</mosaic_0001>

<llo_original>
// kernel: tpu_custom_call.1
$region0: #{tpu_custom_call.1}
  #allocation0 [shape = 'u32[]', space=smem, size = 0x4, offset = 0x4, fixed_abs, tag = 'smem constant byte address 0x4 - core index']
  #allocation1 [shape = 'u32[144,128]{1,0:T(1,128)}', space=vmem, size = 0x12000, scoped, tag = 'internal scratch']
  #allocation2 [shape = 'f32[1,1]{1,0:T(1,128)S(6)}', space=smem, size = 0x200, scoped, tag = 'scoped memory for tpu_custom_call.1']
  %s0 = inlined_call_operand.hbm [shape: bf16[128,512], index: 0, kind: input, shape index: {}]
  %s1 = inlined_call_operand.hbm [shape: bf16[512,256], index: 1, kind: input, shape index: {}]
  %s2 = inlined_call_operand.vmem [shape: f32[1,256], index: 2, kind: input, shape index: {}]
  %s3 = inlined_call_operand.hbm [shape: bf16[256,128], index: 3, kind: input, shape index: {}]
  %s4 = inlined_call_operand.vmem [shape: f32[1,128], index: 4, kind: input, shape index: {}]
  %s5 = inlined_call_operand.vmem [shape: f32[1,128], index: 5, kind: input, shape index: {}]
  %s6 = inlined_call_operand.<no memory space> [shape: f32[1,1], index: 6, kind: input, shape index: {}]
  %s7 = inlined_call_operand.hbm [shape: f32[1,128], index: 7, kind: output, shape index: {}]
  %s8 = sld [smem:[#allocation0]]
  $region50: #{tpu_custom_call.1} parent=0
    _
  %s10 = ssub.s32 1, %s8
  %s11 = scalar_select 0, %s10, %s8
  %12 = sst [smem:[#allocation2]] %s6
  $region1: #{tpu_custom_call.1} parent=0
    #allocation3 [shape = 'u8[131072]{0}', space=vmem, size = 0x20000, scoped, tag = 'input window, operand 0, single buffered']
    #allocation4 [shape = 's32[1]{0}', space=sflag, size = 0x4, scoped, tag = 'scoped memory for tpu_custom_call.1']
    #allocation5 [shape = 's32[1]{0}', space=sflag, size = 0x4, scoped, tag = 'scoped memory for tpu_custom_call.1']
    #allocation6 [shape = 'u8[262144]{0}', space=vmem, size = 0x40000, scoped, tag = 'input window, operand 1, single buffered']
    #allocation7 [shape = 's32[1]{0}', space=sflag, size = 0x4, scoped, tag = 'scoped memory for tpu_custom_call.1']
    #allocation8 [shape = 'u8[65536]{0}', space=vmem, size = 0x10000, scoped, tag = 'input window, operand 3, single buffered']
    #allocation9 [shape = 'u8[512]{0}', space=vmem, size = 0x400, scoped, tag = 'output window, operand 0, single buffered']
    %13 = vsyncpa [#allocation4], 0
    %14 = vsyncpa [#allocation7], 0
    %15 = vsyncpa [#allocation5], 0
    // Predicated region
    $region2: #{tpu_custom_call.1} parent=1 // pred_check
      _
    $region3: #{tpu_custom_call.1} parent=1 // pred_check_branch
      %17 = sbr.rel (0) target = $region5
    $region4: #{tpu_custom_call.1} parent=1 // pred_region
      %s19 = ssub.s32 4096, 4096
      %20 = vsyncadd [#allocation4], %s19
      %s21 = sshll.u32 [#allocation3], 4
      %s22 = int_to_ptr.vmem [resolvable:$true] %s21
      %27 = dma.hbm_to_vmem [thread:$0]  %s0, 4096, %s22, [#allocation4], 256, 256, 16
    $region5: #{tpu_custom_call.1} parent=1 // pred_fallthru
      _
    // Predicated region
    $region6: #{tpu_custom_call.1} parent=1 // pred_check
      _
    $region7: #{tpu_custom_call.1} parent=1 // pred_check_branch
      %29 = sbr.rel (0) target = $region9
    $region8: #{tpu_custom_call.1} parent=1 // pred_region
      %s31 = ssub.s32 8192, 8192
      %32 = vsyncadd [#allocation7], %s31
      %s33 = sshll.u32 [#allocation6], 4
      %s34 = int_to_ptr.vmem [resolvable:$true] %s33
      %39 = dma.hbm_to_vmem [thread:$0]  %s1, 8192, %s34, [#allocation7], 128, 128, 8
    $region9: #{tpu_custom_call.1} parent=1 // pred_fallthru
      _
    // Predicated region
    $region10: #{tpu_custom_call.1} parent=1 // pred_check
      _
    $region11: #{tpu_custom_call.1} parent=1 // pred_check_branch
      %41 = sbr.rel (0) target = $region13
    $region12: #{tpu_custom_call.1} parent=1 // pred_region
      _
    $region13: #{tpu_custom_call.1} parent=1 // pred_fallthru
      _
    // Predicated region
    $region14: #{tpu_custom_call.1} parent=1 // pred_check
      _
    $region15: #{tpu_custom_call.1} parent=1 // pred_check_branch
      %43 = sbr.rel (0) target = $region17
    $region16: #{tpu_custom_call.1} parent=1 // pred_region
      %s45 = ssub.s32 2048, 2048
      %46 = vsyncadd [#allocation7], %s45
      %s47 = sshll.u32 [#allocation8], 4
      %s48 = int_to_ptr.vmem [resolvable:$true] %s47
      %53 = dma.hbm_to_vmem [thread:$0]  %s3, 2048, %s48, [#allocation7], 64, 64, 4
    $region17: #{tpu_custom_call.1} parent=1 // pred_fallthru
      _
    // Predicated region
    $region18: #{tpu_custom_call.1} parent=1 // pred_check
      _
    $region19: #{tpu_custom_call.1} parent=1 // pred_check_branch
      %55 = sbr.rel (0) target = $region21
    $region20: #{tpu_custom_call.1} parent=1 // pred_region
      _
    $region21: #{tpu_custom_call.1} parent=1 // pred_fallthru
      _
    // Predicated region
    $region22: #{tpu_custom_call.1} parent=1 // pred_check
      _
    $region23: #{tpu_custom_call.1} parent=1 // pred_check_branch
      %57 = sbr.rel (0) target = $region25
    $region24: #{tpu_custom_call.1} parent=1 // pred_region
      _
    $region25: #{tpu_custom_call.1} parent=1 // pred_fallthru
      _
    // Predicated region
    $region26: #{tpu_custom_call.1} parent=1 // pred_check
      _
    $region27: #{tpu_custom_call.1} parent=1 // pred_check_branch
      %59 = sbr.rel (0) target = $region29
    $region28: #{tpu_custom_call.1} parent=1 // pred_region
      _
    $region29: #{tpu_custom_call.1} parent=1 // pred_fallthru
      _
    // Predicated region
    $region30: #{tpu_custom_call.1} parent=1 // pred_check
      _
    $region31: #{tpu_custom_call.1} parent=1 // pred_check_branch
      %61 = sbr.rel (0) target = $region33
    $region32: #{tpu_custom_call.1} parent=1 // pred_region
      %62 = dma.done [#allocation4], 4096
    $region33: #{tpu_custom_call.1} parent=1 // pred_fallthru
      _
    // Predicated region
    $region34: #{tpu_custom_call.1} parent=1 // pred_check
      _
    $region35: #{tpu_custom_call.1} parent=1 // pred_check_branch
      %64 = sbr.rel (0) target = $region37
    $region36: #{tpu_custom_call.1} parent=1 // pred_region
      %65 = dma.done [#allocation7], 8192
    $region37: #{tpu_custom_call.1} parent=1 // pred_fallthru
      _
    // Predicated region
    $region38: #{tpu_custom_call.1} parent=1 // pred_check
      _
    $region39: #{tpu_custom_call.1} parent=1 // pred_check_branch
      %67 = sbr.rel (0) target = $region41
    $region40: #{tpu_custom_call.1} parent=1 // pred_region
      %68 = dma.done [#allocation7], 2048
    $region41: #{tpu_custom_call.1} parent=1 // pred_fallthru
      _
    %v70 = vld [vmem:[#allocation3] sm:$0xff]
    %v71 = vld [vmem:[#allocation3 + $0x8] sm:$0xff]
    %v72 = vld [vmem:[#allocation3 + $0x10] sm:$0xff]
    %v73 = vld [vmem:[#allocation3 + $0x18] sm:$0xff]
    %v74 = vld [vmem:[#allocation3 + $0x20] sm:$0xff]
    %v75 = vld [vmem:[#allocation3 + $0x28] sm:$0xff]
    %v76 = vld [vmem:[#allocation3 + $0x30] sm:$0xff]
    %v77 = vld [vmem:[#allocation3 + $0x38] sm:$0xff]
    %v78 = vld [vmem:[#allocation3 + $0x40] sm:$0xff]
    %v79 = vld [vmem:[#allocation3 + $0x48] sm:$0xff]
    %v80 = vld [vmem:[#allocation3 + $0x50] sm:$0xff]
    %v81 = vld [vmem:[#allocation3 + $0x58] sm:$0xff]
    %v82 = vld [vmem:[#allocation3 + $0x60] sm:$0xff]
    %v83 = vld [vmem:[#allocation3 + $0x68] sm:$0xff]
    %v84 = vld [vmem:[#allocation3 + $0x70] sm:$0xff]
    %v85 = vld [vmem:[#allocation3 + $0x78] sm:$0xff]
    %v86 = vld [vmem:[#allocation3 + $0x80] sm:$0xff]
    %v87 = vld [vmem:[#allocation3 + $0x88] sm:$0xff]
    %v88 = vld [vmem:[#allocation3 + $0x90] sm:$0xff]
    %v89 = vld [vmem:[#allocation3 + $0x98] sm:$0xff]
    %v90 = vld [vmem:[#allocation3 + $0xa0] sm:$0xff]
    %v91 = vld [vmem:[#allocation3 + $0xa8] sm:$0xff]
    %v92 = vld [vmem:[#allocation3 + $0xb0] sm:$0xff]
    %v93 = vld [vmem:[#allocation3 + $0xb8] sm:$0xff]
    %v94 = vld [vmem:[#allocation3 + $0xc0] sm:$0xff]
    %v95 = vld [vmem:[#allocation3 + $0xc8] sm:$0xff]
    %v96 = vld [vmem:[#allocation3 + $0xd0] sm:$0xff]
    %v97 = vld [vmem:[#allocation3 + $0xd8] sm:$0xff]
    %v98 = vld [vmem:[#allocation3 + $0xe0] sm:$0xff]
    %v99 = vld [vmem:[#allocation3 + $0xe8] sm:$0xff]
    %v100 = vld [vmem:[#allocation3 + $0xf0] sm:$0xff]
    %v101 = vld [vmem:[#allocation3 + $0xf8] sm:$0xff]
    %v102 = vld [vmem:[#allocation6] sm:$0xff]
    %v103 = vld [vmem:[#allocation6 + $0x8] sm:$0xff]
    %v104 = vld [vmem:[#allocation6 + $0x10] sm:$0xff]
    %v105 = vld [vmem:[#allocation6 + $0x18] sm:$0xff]
    %v106 = vld [vmem:[#allocation6 + $0x20] sm:$0xff]
    %v107 = vld [vmem:[#allocation6 + $0x28] sm:$0xff]
    %v108 = vld [vmem:[#allocation6 + $0x30] sm:$0xff]
    %v109 = vld [vmem:[#allocation6 + $0x38] sm:$0xff]
    %v110 = vld [vmem:[#allocation6 + $0x40] sm:$0xff]
    %v111 = vld [vmem:[#allocation6 + $0x48] sm:$0xff]
    %v112 = vld [vmem:[#allocation6 + $0x50] sm:$0xff]
    %v113 = vld [vmem:[#allocation6 + $0x58] sm:$0xff]
    %v114 = vld [vmem:[#allocation6 + $0x60] sm:$0xff]
    %v115 = vld [vmem:[#allocation6 + $0x68] sm:$0xff]
    %v116 = vld [vmem:[#allocation6 + $0x70] sm:$0xff]
    %v117 = vld [vmem:[#allocation6 + $0x78] sm:$0xff]
    %v118 = vld [vmem:[#allocation6 + $0x80] sm:$0xff]
    %v119 = vld [vmem:[#allocation6 + $0x88] sm:$0xff]
    %v120 = vld [vmem:[#allocation6 + $0x90] sm:$0xff]
    %v121 = vld [vmem:[#allocation6 + $0x98] sm:$0xff]
    %v122 = vld [vmem:[#allocation6 + $0xa0] sm:$0xff]
    %v123 = vld [vmem:[#allocation6 + $0xa8] sm:$0xff]
    %v124 = vld [vmem:[#allocation6 + $0xb0] sm:$0xff]
    %v125 = vld [vmem:[#allocation6 + $0xb8] sm:$0xff]
    %v126 = vld [vmem:[#allocation6 + $0xc0] sm:$0xff]
    %v127 = vld [vmem:[#allocation6 + $0xc8] sm:$0xff]
    %v128 = vld [vmem:[#allocation6 + $0xd0] sm:$0xff]
    %v129 = vld [vmem:[#allocation6 + $0xd8] sm:$0xff]
    %v130 = vld [vmem:[#allocation6 + $0xe0] sm:$0xff]
    %v131 = vld [vmem:[#allocation6 + $0xe8] sm:$0xff]
    %v132 = vld [vmem:[#allocation6 + $0xf0] sm:$0xff]
    %v133 = vld [vmem:[#allocation6 + $0xf8] sm:$0xff]
    %v134 = vld [vmem:[#allocation6 + $0x100] sm:$0xff]
    %v135 = vld [vmem:[#allocation6 + $0x108] sm:$0xff]
    %v136 = vld [vmem:[#allocation6 + $0x110] sm:$0xff]
    %v137 = vld [vmem:[#allocation6 + $0x118] sm:$0xff]
    %v138 = vld [vmem:[#allocation6 + $0x120] sm:$0xff]
    %v139 = vld [vmem:[#allocation6 + $0x128] sm:$0xff]
    %v140 = vld [vmem:[#allocation6 + $0x130] sm:$0xff]
    %v141 = vld [vmem:[#allocation6 + $0x138] sm:$0xff]
    %v142 = vld [vmem:[#allocation6 + $0x140] sm:$0xff]
    %v143 = vld [vmem:[#allocation6 + $0x148] sm:$0xff]
    %v144 = vld [vmem:[#allocation6 + $0x150] sm:$0xff]
    %v145 = vld [vmem:[#allocation6 + $0x158] sm:$0xff]
    %v146 = vld [vmem:[#allocation6 + $0x160] sm:$0xff]
    %v147 = vld [vmem:[#allocation6 + $0x168] sm:$0xff]
    %v148 = vld [vmem:[#allocation6 + $0x170] sm:$0xff]
    %v149 = vld [vmem:[#allocation6 + $0x178] sm:$0xff]
    %v150 = vld [vmem:[#allocation6 + $0x180] sm:$0xff]
    %v151 = vld [vmem:[#allocation6 + $0x188] sm:$0xff]
    %v152 = vld [vmem:[#allocation6 + $0x190] sm:$0xff]
    %v153 = vld [vmem:[#allocation6 + $0x198] sm:$0xff]
    %v154 = vld [vmem:[#allocation6 + $0x1a0] sm:$0xff]
    %v155 = vld [vmem:[#allocation6 + $0x1a8] sm:$0xff]
    %v156 = vld [vmem:[#allocation6 + $0x1b0] sm:$0xff]
    %v157 = vld [vmem:[#allocation6 + $0x1b8] sm:$0xff]
    %v158 = vld [vmem:[#allocation6 + $0x1c0] sm:$0xff]
    %v159 = vld [vmem:[#allocation6 + $0x1c8] sm:$0xff]
    %v160 = vld [vmem:[#allocation6 + $0x1d0] sm:$0xff]
    %v161 = vld [vmem:[#allocation6 + $0x1d8] sm:$0xff]
    %v162 = vld [vmem:[#allocation6 + $0x1e0] sm:$0xff]
    %v163 = vld [vmem:[#allocation6 + $0x1e8] sm:$0xff]
    %v164 = vld [vmem:[#allocation6 + $0x1f0] sm:$0xff]
    %v165 = vld [vmem:[#allocation6 + $0x1f8] sm:$0xff]
    %v166 = vld [vmem:[%s2] sm:$0x3]
    %v168 = vlaneseq
    %v169 = vshrl.u32 %v168, 7
    %v170 = vsub.s32 0, %v169
    %v171 = vrot.slane %v166, %v170
    %v172 = vlaneseq
    %v173 = vshrl.u32 %v172, 7
    %v174 = vsub.s32 1, %v173
    %v175 = vrot.slane %v166, %v174
    %v210 = vunpack.c.l.b16 %v70
    %v211 = vunpack.c.h.b16 %v70
    %v212 = vunpack.c.l.b16 %v71
    %v213 = vunpack.c.h.b16 %v71
    %v214 = vunpack.c.l.b16 %v72
    %v215 = vunpack.c.h.b16 %v72
    %v216 = vunpack.c.l.b16 %v73
    %v217 = vunpack.c.h.b16 %v73
    %v218 = vunpack.c.l.b16 %v74
    %v219 = vunpack.c.h.b16 %v74
    %v220 = vunpack.c.l.b16 %v75
    %v221 = vunpack.c.h.b16 %v75
    %v222 = vunpack.c.l.b16 %v76
    %v223 = vunpack.c.h.b16 %v76
    %v224 = vunpack.c.l.b16 %v77
    %v225 = vunpack.c.h.b16 %v77
    %v226 = vunpack.c.l.b16 %v78
    %v227 = vunpack.c.h.b16 %v78
    %v228 = vunpack.c.l.b16 %v79
    %v229 = vunpack.c.h.b16 %v79
    %v230 = vunpack.c.l.b16 %v80
    %v231 = vunpack.c.h.b16 %v80
    %v232 = vunpack.c.l.b16 %v81
    %v233 = vunpack.c.h.b16 %v81
    %v234 = vunpack.c.l.b16 %v82
    %v235 = vunpack.c.h.b16 %v82
    %v236 = vunpack.c.l.b16 %v83
    %v237 = vunpack.c.h.b16 %v83
    %v238 = vunpack.c.l.b16 %v84
    %v239 = vunpack.c.h.b16 %v84
    %v240 = vunpack.c.l.b16 %v85
    %v241 = vunpack.c.h.b16 %v85
    %v242 = vunpack.c.l.b16 %v86
    %v243 = vunpack.c.h.b16 %v86
    %v244 = vunpack.c.l.b16 %v87
    %v245 = vunpack.c.h.b16 %v87
    %v246 = vunpack.c.l.b16 %v88
    %v247 = vunpack.c.h.b16 %v88
    %v248 = vunpack.c.l.b16 %v89
    %v249 = vunpack.c.h.b16 %v89
    %v250 = vunpack.c.l.b16 %v90
    %v251 = vunpack.c.h.b16 %v90
    %v252 = vunpack.c.l.b16 %v91
    %v253 = vunpack.c.h.b16 %v91
    %v254 = vunpack.c.l.b16 %v92
    %v255 = vunpack.c.h.b16 %v92
    %v256 = vunpack.c.l.b16 %v93
    %v257 = vunpack.c.h.b16 %v93
    %v258 = vunpack.c.l.b16 %v94
    %v259 = vunpack.c.h.b16 %v94
    %v260 = vunpack.c.l.b16 %v95
    %v261 = vunpack.c.h.b16 %v95
    %v262 = vunpack.c.l.b16 %v96
    %v263 = vunpack.c.h.b16 %v96
    %v264 = vunpack.c.l.b16 %v97
    %v265 = vunpack.c.h.b16 %v97
    %v266 = vunpack.c.l.b16 %v98
    %v267 = vunpack.c.h.b16 %v98
    %v268 = vunpack.c.l.b16 %v99
    %v269 = vunpack.c.h.b16 %v99
    %v270 = vunpack.c.l.b16 %v100
    %v271 = vunpack.c.h.b16 %v100
    %v272 = vunpack.c.l.b16 %v101
    %v273 = vunpack.c.h.b16 %v101
    %v274 = vpack.c.b16 %v214, %v210
    %v275 = vpack.c.b16 %v215, %v211
    %v276 = vpack.c.b16 %v216, %v212
    %v277 = vpack.c.b16 %v217, %v213
    %v278 = vpack.c.b16 %v222, %v218
    %v279 = vpack.c.b16 %v223, %v219
    %v280 = vpack.c.b16 %v224, %v220
    %v281 = vpack.c.b16 %v225, %v221
    %v282 = vpack.c.b16 %v230, %v226
    %v283 = vpack.c.b16 %v231, %v227
    %v284 = vpack.c.b16 %v232, %v228
    %v285 = vpack.c.b16 %v233, %v229
    %v286 = vpack.c.b16 %v238, %v234
    %v287 = vpack.c.b16 %v239, %v235
    %v288 = vpack.c.b16 %v240, %v236
    %v289 = vpack.c.b16 %v241, %v237
    %v290 = vpack.c.b16 %v246, %v242
    %v291 = vpack.c.b16 %v247, %v243
    %v292 = vpack.c.b16 %v248, %v244
    %v293 = vpack.c.b16 %v249, %v245
    %v294 = vpack.c.b16 %v254, %v250
    %v295 = vpack.c.b16 %v255, %v251
    %v296 = vpack.c.b16 %v256, %v252
    %v297 = vpack.c.b16 %v257, %v253
    %v298 = vpack.c.b16 %v262, %v258
    %v299 = vpack.c.b16 %v263, %v259
    %v300 = vpack.c.b16 %v264, %v260
    %v301 = vpack.c.b16 %v265, %v261
    %v302 = vpack.c.b16 %v270, %v266
    %v303 = vpack.c.b16 %v271, %v267
    %v304 = vpack.c.b16 %v272, %v268
    %v305 = vpack.c.b16 %v273, %v269
    %v402 = vunpack.c.l.b16 %v102
    %v403 = vunpack.c.h.b16 %v102
    %v404 = vunpack.c.l.b16 %v103
    %v405 = vunpack.c.h.b16 %v103
    %v406 = vunpack.c.l.b16 %v104
    %v407 = vunpack.c.h.b16 %v104
    %v408 = vunpack.c.l.b16 %v105
    %v409 = vunpack.c.h.b16 %v105
    %v410 = vunpack.c.l.b16 %v106
    %v411 = vunpack.c.h.b16 %v106
    %v412 = vunpack.c.l.b16 %v107
    %v413 = vunpack.c.h.b16 %v107
    %v414 = vunpack.c.l.b16 %v108
    %v415 = vunpack.c.h.b16 %v108
    %v416 = vunpack.c.l.b16 %v109
    %v417 = vunpack.c.h.b16 %v109
    %v418 = vunpack.c.l.b16 %v110
    %v419 = vunpack.c.h.b16 %v110
    %v420 = vunpack.c.l.b16 %v111
    %v421 = vunpack.c.h.b16 %v111
    %v422 = vunpack.c.l.b16 %v112
    %v423 = vunpack.c.h.b16 %v112
    %v424 = vunpack.c.l.b16 %v113
    %v425 = vunpack.c.h.b16 %v113
    %v426 = vunpack.c.l.b16 %v114
    %v427 = vunpack.c.h.b16 %v114
    %v428 = vunpack.c.l.b16 %v115
    %v429 = vunpack.c.h.b16 %v115
    %v430 = vunpack.c.l.b16 %v116
    %v431 = vunpack.c.h.b16 %v116
    %v432 = vunpack.c.l.b16 %v117
    %v433 = vunpack.c.h.b16 %v117
    %v434 = vunpack.c.l.b16 %v118
    %v435 = vunpack.c.h.b16 %v118
    %v436 = vunpack.c.l.b16 %v119
    %v437 = vunpack.c.h.b16 %v119
    %v438 = vunpack.c.l.b16 %v120
    %v439 = vunpack.c.h.b16 %v120
    %v440 = vunpack.c.l.b16 %v121
    %v441 = vunpack.c.h.b16 %v121
    %v442 = vunpack.c.l.b16 %v122
    %v443 = vunpack.c.h.b16 %v122
    %v444 = vunpack.c.l.b16 %v123
    %v445 = vunpack.c.h.b16 %v123
    %v446 = vunpack.c.l.b16 %v124
    %v447 = vunpack.c.h.b16 %v124
    %v448 = vunpack.c.l.b16 %v125
    %v449 = vunpack.c.h.b16 %v125
    %v450 = vunpack.c.l.b16 %v126
    %v451 = vunpack.c.h.b16 %v126
    %v452 = vunpack.c.l.b16 %v127
    %v453 = vunpack.c.h.b16 %v127
    %v454 = vunpack.c.l.b16 %v128
    %v455 = vunpack.c.h.b16 %v128
    %v456 = vunpack.c.l.b16 %v129
    %v457 = vunpack.c.h.b16 %v129
    %v458 = vunpack.c.l.b16 %v130
    %v459 = vunpack.c.h.b16 %v130
    %v460 = vunpack.c.l.b16 %v131
    %v461 = vunpack.c.h.b16 %v131
    %v462 = vunpack.c.l.b16 %v132
    %v463 = vunpack.c.h.b16 %v132
    %v464 = vunpack.c.l.b16 %v133
    %v465 = vunpack.c.h.b16 %v133
    %v466 = vunpack.c.l.b16 %v134
    %v467 = vunpack.c.h.b16 %v134
    %v468 = vunpack.c.l.b16 %v135
    %v469 = vunpack.c.h.b16 %v135
    %v470 = vunpack.c.l.b16 %v136
    %v471 = vunpack.c.h.b16 %v136
    %v472 = vunpack.c.l.b16 %v137
    %v473 = vunpack.c.h.b16 %v137
    %v474 = vunpack.c.l.b16 %v138
    %v475 = vunpack.c.h.b16 %v138
    %v476 = vunpack.c.l.b16 %v139
    %v477 = vunpack.c.h.b16 %v139
    %v478 = vunpack.c.l.b16 %v140
    %v479 = vunpack.c.h.b16 %v140
    %v480 = vunpack.c.l.b16 %v141
    %v481 = vunpack.c.h.b16 %v141
    %v482 = vunpack.c.l.b16 %v142
    %v483 = vunpack.c.h.b16 %v142
    %v484 = vunpack.c.l.b16 %v143
    %v485 = vunpack.c.h.b16 %v143
    %v486 = vunpack.c.l.b16 %v144
    %v487 = vunpack.c.h.b16 %v144
    %v488 = vunpack.c.l.b16 %v145
    %v489 = vunpack.c.h.b16 %v145
    %v490 = vunpack.c.l.b16 %v146
    %v491 = vunpack.c.h.b16 %v146
    %v492 = vunpack.c.l.b16 %v147
    %v493 = vunpack.c.h.b16 %v147
    %v494 = vunpack.c.l.b16 %v148
    %v495 = vunpack.c.h.b16 %v148
    %v496 = vunpack.c.l.b16 %v149
    %v497 = vunpack.c.h.b16 %v149
    %v498 = vunpack.c.l.b16 %v150
    %v499 = vunpack.c.h.b16 %v150
    %v500 = vunpack.c.l.b16 %v151
    %v501 = vunpack.c.h.b16 %v151
    %v502 = vunpack.c.l.b16 %v152
    %v503 = vunpack.c.h.b16 %v152
    %v504 = vunpack.c.l.b16 %v153
    %v505 = vunpack.c.h.b16 %v153
    %v506 = vunpack.c.l.b16 %v154
    %v507 = vunpack.c.h.b16 %v154
    %v508 = vunpack.c.l.b16 %v155
    %v509 = vunpack.c.h.b16 %v155
    %v510 = vunpack.c.l.b16 %v156
    %v511 = vunpack.c.h.b16 %v156
    %v512 = vunpack.c.l.b16 %v157
    %v513 = vunpack.c.h.b16 %v157
    %v514 = vunpack.c.l.b16 %v158
    %v515 = vunpack.c.h.b16 %v158
    %v516 = vunpack.c.l.b16 %v159
    %v517 = vunpack.c.h.b16 %v159
    %v518 = vunpack.c.l.b16 %v160
    %v519 = vunpack.c.h.b16 %v160
    %v520 = vunpack.c.l.b16 %v161
    %v521 = vunpack.c.h.b16 %v161
    %v522 = vunpack.c.l.b16 %v162
    %v523 = vunpack.c.h.b16 %v162
    %v524 = vunpack.c.l.b16 %v163
    %v525 = vunpack.c.h.b16 %v163
    %v526 = vunpack.c.l.b16 %v164
    %v527 = vunpack.c.h.b16 %v164
    %v528 = vunpack.c.l.b16 %v165
    %v529 = vunpack.c.h.b16 %v165
    %v530 = vpack.c.b16 %v404, %v402
    %v531 = vpack.c.b16 %v405, %v403
    %v532 = vpack.c.b16 %v408, %v406
    %v533 = vpack.c.b16 %v409, %v407
    %v534 = vpack.c.b16 %v412, %v410
    %v535 = vpack.c.b16 %v413, %v411
    %v536 = vpack.c.b16 %v416, %v414
    %v537 = vpack.c.b16 %v417, %v415
    %v538 = vpack.c.b16 %v420, %v418
    %v539 = vpack.c.b16 %v421, %v419
    %v540 = vpack.c.b16 %v424, %v422
    %v541 = vpack.c.b16 %v425, %v423
    %v542 = vpack.c.b16 %v428, %v426
    %v543 = vpack.c.b16 %v429, %v427
    %v544 = vpack.c.b16 %v432, %v430
    %v545 = vpack.c.b16 %v433, %v431
    %v546 = vpack.c.b16 %v436, %v434
    %v547 = vpack.c.b16 %v437, %v435
    %v548 = vpack.c.b16 %v440, %v438
    %v549 = vpack.c.b16 %v441, %v439
    %v550 = vpack.c.b16 %v444, %v442
    %v551 = vpack.c.b16 %v445, %v443
    %v552 = vpack.c.b16 %v448, %v446
    %v553 = vpack.c.b16 %v449, %v447
    %v554 = vpack.c.b16 %v452, %v450
    %v555 = vpack.c.b16 %v453, %v451
    %v556 = vpack.c.b16 %v456, %v454
    %v557 = vpack.c.b16 %v457, %v455
    %v558 = vpack.c.b16 %v460, %v458
    %v559 = vpack.c.b16 %v461, %v459
    %v560 = vpack.c.b16 %v464, %v462
    %v561 = vpack.c.b16 %v465, %v463
    %v562 = vpack.c.b16 %v468, %v466
    %v563 = vpack.c.b16 %v469, %v467
    %v564 = vpack.c.b16 %v472, %v470
    %v565 = vpack.c.b16 %v473, %v471
    %v566 = vpack.c.b16 %v476, %v474
    %v567 = vpack.c.b16 %v477, %v475
    %v568 = vpack.c.b16 %v480, %v478
    %v569 = vpack.c.b16 %v481, %v479
    %v570 = vpack.c.b16 %v484, %v482
    %v571 = vpack.c.b16 %v485, %v483
    %v572 = vpack.c.b16 %v488, %v486
    %v573 = vpack.c.b16 %v489, %v487
    %v574 = vpack.c.b16 %v492, %v490
    %v575 = vpack.c.b16 %v493, %v491
    %v576 = vpack.c.b16 %v496, %v494
    %v577 = vpack.c.b16 %v497, %v495
    %v578 = vpack.c.b16 %v500, %v498
    %v579 = vpack.c.b16 %v501, %v499
    %v580 = vpack.c.b16 %v504, %v502
    %v581 = vpack.c.b16 %v505, %v503
    %v582 = vpack.c.b16 %v508, %v506
    %v583 = vpack.c.b16 %v509, %v507
    %v584 = vpack.c.b16 %v512, %v510
    %v585 = vpack.c.b16 %v513, %v511
    %v586 = vpack.c.b16 %v516, %v514
    %v587 = vpack.c.b16 %v517, %v515
    %v588 = vpack.c.b16 %v520, %v518
    %v589 = vpack.c.b16 %v521, %v519
    %v590 = vpack.c.b16 %v524, %v522
    %v591 = vpack.c.b16 %v525, %v523
    %v592 = vpack.c.b16 %v528, %v526
    %v593 = vpack.c.b16 %v529, %v527
    %658 = vmatprep.subr.bf16.mxu0 %v531
    %659 = vmatpush1.bf16.msra.mxu0 %v530
    %660 = vmatprep.subr.bf16.mxu0 %v533
    %661 = vmatpush1.bf16.msra.mxu0 %v532
    %662 = vmatprep.subr.bf16.mxu0 %v535
    %663 = vmatpush1.bf16.msra.mxu0 %v534
    %664 = vmatprep.subr.bf16.mxu0 %v537
    %665 = vmatpush1.bf16.msra.mxu0 %v536
    %666 = vmatprep.subr.bf16.mxu0 %v539
    %667 = vmatpush1.bf16.msra.mxu0 %v538
    %668 = vmatprep.subr.bf16.mxu0 %v541
    %669 = vmatpush1.bf16.msra.mxu0 %v540
    %670 = vmatprep.subr.bf16.mxu0 %v543
    %671 = vmatpush1.bf16.msra.mxu0 %v542
    %672 = vmatprep.subr.bf16.mxu0 %v545
    %673 = vmatpush1.bf16.msra.mxu0 %v544
    %674 = vmatprep.subr.bf16.mxu0 %v547
    %675 = vmatpush1.bf16.msra.mxu0 %v546
    %676 = vmatprep.subr.bf16.mxu0 %v549
    %677 = vmatpush1.bf16.msra.mxu0 %v548
    %678 = vmatprep.subr.bf16.mxu0 %v551
    %679 = vmatpush1.bf16.msra.mxu0 %v550
    %680 = vmatprep.subr.bf16.mxu0 %v553
    %681 = vmatpush1.bf16.msra.mxu0 %v552
    %682 = vmatprep.subr.bf16.mxu0 %v555
    %683 = vmatpush1.bf16.msra.mxu0 %v554
    %684 = vmatprep.subr.bf16.mxu0 %v557
    %685 = vmatpush1.bf16.msra.mxu0 %v556
    %686 = vmatprep.subr.bf16.mxu0 %v559
    %687 = vmatpush1.bf16.msra.mxu0 %v558
    %688 = vmatprep.subr.bf16.mxu0 %v561
    %689 = vmatpush1.bf16.msra.mxu0 %v560
    %690 = vmatprep.mubr.bf16.mxu0 %v275
    %691 = vmatmul.mubr.bf16.gmra.mrb[0].mxu0 %v274
    %v692 = vpop.f32.mrb[0].mxu0
    %v693 = vadd.f32 %v171, %v692
    %v694 = vpop.f32.mrb[0].mxu0
    %v695 = vadd.f32 %v175, %v694
    %v696 = vpop.f32.mrb[0].mxu0
    %v697 = vadd.f32 %v171, %v696
    %v698 = vpop.f32.mrb[0].mxu0
    %v699 = vadd.f32 %v175, %v698
    %700 = vmatprep.mubr.bf16.mxu0 %v279
    %701 = vmatmul.mubr.bf16.gmra.mrb[0].mxu0 %v278
    %v702 = vpop.f32.mrb[0].mxu0
    %v703 = vadd.f32 %v171, %v702
    %v704 = vpop.f32.mrb[0].mxu0
    %v705 = vadd.f32 %v175, %v704
    %v706 = vpop.f32.mrb[0].mxu0
    %v707 = vadd.f32 %v171, %v706
    %v708 = vpop.f32.mrb[0].mxu0
    %v709 = vadd.f32 %v175, %v708
    %710 = vmatprep.mubr.bf16.mxu0 %v283
    %711 = vmatmul.mubr.bf16.gmra.mrb[0].mxu0 %v282
    %v712 = vpop.f32.mrb[0].mxu0
    %v713 = vadd.f32 %v171, %v712
    %v714 = vpop.f32.mrb[0].mxu0
    %v715 = vadd.f32 %v175, %v714
    %v716 = vpop.f32.mrb[0].mxu0
    %v717 = vadd.f32 %v171, %v716
    %v718 = vpop.f32.mrb[0].mxu0
    %v719 = vadd.f32 %v175, %v718
    %720 = vmatprep.mubr.bf16.mxu0 %v287
    %721 = vmatmul.mubr.bf16.gmra.mrb[0].mxu0 %v286
    %v722 = vpop.f32.mrb[0].mxu0
    %v723 = vadd.f32 %v171, %v722
    %v724 = vpop.f32.mrb[0].mxu0
    %v725 = vadd.f32 %v175, %v724
    %v726 = vpop.f32.mrb[0].mxu0
    %v727 = vadd.f32 %v171, %v726
    %v728 = vpop.f32.mrb[0].mxu0
    %v729 = vadd.f32 %v175, %v728
    %730 = vmatprep.mubr.bf16.mxu0 %v291
    %731 = vmatmul.mubr.bf16.gmra.mrb[0].mxu0 %v290
    %v732 = vpop.f32.mrb[0].mxu0
    %v733 = vadd.f32 %v171, %v732
    %v734 = vpop.f32.mrb[0].mxu0
    %v735 = vadd.f32 %v175, %v734
    %v736 = vpop.f32.mrb[0].mxu0
    %v737 = vadd.f32 %v171, %v736
    %v738 = vpop.f32.mrb[0].mxu0
    %v739 = vadd.f32 %v175, %v738
    %740 = vmatprep.mubr.bf16.mxu0 %v295
    %741 = vmatmul.mubr.bf16.gmra.mrb[0].mxu0 %v294
    %v742 = vpop.f32.mrb[0].mxu0
    %v743 = vadd.f32 %v171, %v742
    %v744 = vpop.f32.mrb[0].mxu0
    %v745 = vadd.f32 %v175, %v744
    %v746 = vpop.f32.mrb[0].mxu0
    %v747 = vadd.f32 %v171, %v746
    %v748 = vpop.f32.mrb[0].mxu0
    %v749 = vadd.f32 %v175, %v748
    %750 = vmatprep.mubr.bf16.mxu0 %v299
    %751 = vmatmul.mubr.bf16.gmra.mrb[0].mxu0 %v298
    %v752 = vpop.f32.mrb[0].mxu0
    %v753 = vadd.f32 %v171, %v752
    %v754 = vpop.f32.mrb[0].mxu0
    %v755 = vadd.f32 %v175, %v754
    %v756 = vpop.f32.mrb[0].mxu0
    %v757 = vadd.f32 %v171, %v756
    %v758 = vpop.f32.mrb[0].mxu0
    %v759 = vadd.f32 %v175, %v758
    %760 = vmatprep.mubr.bf16.mxu0 %v303
    %761 = vmatmul.mubr.bf16.gmra.mrb[0].mxu0 %v302
    %v762 = vpop.f32.mrb[0].mxu0
    %v763 = vadd.f32 %v171, %v762
    %v764 = vpop.f32.mrb[0].mxu0
    %v765 = vadd.f32 %v175, %v764
    %v766 = vpop.f32.mrb[0].mxu0
    %v767 = vadd.f32 %v171, %v766
    %v768 = vpop.f32.mrb[0].mxu0
    %v769 = vadd.f32 %v175, %v768
    %770 = vdwg.mxu0
    %771 = vmatprep.subr.bf16.mxu0 %v563
    %772 = vmatpush1.bf16.msra.mxu0 %v562
    %773 = vmatprep.subr.bf16.mxu0 %v565
    %774 = vmatpush1.bf16.msra.mxu0 %v564
    %775 = vmatprep.subr.bf16.mxu0 %v567
    %776 = vmatpush1.bf16.msra.mxu0 %v566
    %777 = vmatprep.subr.bf16.mxu0 %v569
    %778 = vmatpush1.bf16.msra.mxu0 %v568
    %779 = vmatprep.subr.bf16.mxu0 %v571
    %780 = vmatpush1.bf16.msra.mxu0 %v570
    %781 = vmatprep.subr.bf16.mxu0 %v573
    %782 = vmatpush1.bf16.msra.mxu0 %v572
    %783 = vmatprep.subr.bf16.mxu0 %v575
    %784 = vmatpush1.bf16.msra.mxu0 %v574
    %785 = vmatprep.subr.bf16.mxu0 %v577
    %786 = vmatpush1.bf16.msra.mxu0 %v576
    %787 = vmatprep.subr.bf16.mxu0 %v579
    %788 = vmatpush1.bf16.msra.mxu0 %v578
    %789 = vmatprep.subr.bf16.mxu0 %v581
    %790 = vmatpush1.bf16.msra.mxu0 %v580
    %791 = vmatprep.subr.bf16.mxu0 %v583
    %792 = vmatpush1.bf16.msra.mxu0 %v582
    %793 = vmatprep.subr.bf16.mxu0 %v585
    %794 = vmatpush1.bf16.msra.mxu0 %v584
    %795 = vmatprep.subr.bf16.mxu0 %v587
    %796 = vmatpush1.bf16.msra.mxu0 %v586
    %797 = vmatprep.subr.bf16.mxu0 %v589
    %798 = vmatpush1.bf16.msra.mxu0 %v588
    %799 = vmatprep.subr.bf16.mxu0 %v591
    %800 = vmatpush1.bf16.msra.mxu0 %v590
    %801 = vmatprep.subr.bf16.mxu0 %v593
    %802 = vmatpush1.bf16.msra.mxu0 %v592
    %803 = vmatprep.mubr.bf16.mxu0 %v277
    %804 = vmatmul.mubr.bf16.gmra.mrb[0].mxu0 %v276
    %v805 = vpop.f32.mrb[0].mxu0
    %v806 = vadd.f32 %v693, %v805
    %v807 = vpop.f32.mrb[0].mxu0
    %v808 = vadd.f32 %v695, %v807
    %v809 = vpop.f32.mrb[0].mxu0
    %v810 = vadd.f32 %v697, %v809
    %v811 = vpop.f32.mrb[0].mxu0
    %v812 = vadd.f32 %v699, %v811
    %813 = vmatprep.mubr.bf16.mxu0 %v281
    %814 = vmatmul.mubr.bf16.gmra.mrb[0].mxu0 %v280
    %v815 = vpop.f32.mrb[0].mxu0
    %v816 = vadd.f32 %v703, %v815
    %v817 = vpop.f32.mrb[0].mxu0
    %v818 = vadd.f32 %v705, %v817
    %v819 = vpop.f32.mrb[0].mxu0
    %v820 = vadd.f32 %v707, %v819
    %v821 = vpop.f32.mrb[0].mxu0
    %v822 = vadd.f32 %v709, %v821
    %823 = vmatprep.mubr.bf16.mxu0 %v285
    %824 = vmatmul.mubr.bf16.gmra.mrb[0].mxu0 %v284
    %v825 = vpop.f32.mrb[0].mxu0
    %v826 = vadd.f32 %v713, %v825
    %v827 = vpop.f32.mrb[0].mxu0
    %v828 = vadd.f32 %v715, %v827
    %v829 = vpop.f32.mrb[0].mxu0
    %v830 = vadd.f32 %v717, %v829
    %v831 = vpop.f32.mrb[0].mxu0
    %v832 = vadd.f32 %v719, %v831
    %833 = vmatprep.mubr.bf16.mxu0 %v289
    %834 = vmatmul.mubr.bf16.gmra.mrb[0].mxu0 %v288
    %v835 = vpop.f32.mrb[0].mxu0
    %v836 = vadd.f32 %v723, %v835
    %v837 = vpop.f32.mrb[0].mxu0
    %v838 = vadd.f32 %v725, %v837
    %v839 = vpop.f32.mrb[0].mxu0
    %v840 = vadd.f32 %v727, %v839
    %v841 = vpop.f32.mrb[0].mxu0
    %v842 = vadd.f32 %v729, %v841
    %843 = vmatprep.mubr.bf16.mxu0 %v293
    %844 = vmatmul.mubr.bf16.gmra.mrb[0].mxu0 %v292
    %v845 = vpop.f32.mrb[0].mxu0
    %v846 = vadd.f32 %v733, %v845
    %v847 = vpop.f32.mrb[0].mxu0
    %v848 = vadd.f32 %v735, %v847
    %v849 = vpop.f32.mrb[0].mxu0
    %v850 = vadd.f32 %v737, %v849
    %v851 = vpop.f32.mrb[0].mxu0
    %v852 = vadd.f32 %v739, %v851
    %853 = vmatprep.mubr.bf16.mxu0 %v297
    %854 = vmatmul.mubr.bf16.gmra.mrb[0].mxu0 %v296
    %v855 = vpop.f32.mrb[0].mxu0
    %v856 = vadd.f32 %v743, %v855
    %v857 = vpop.f32.mrb[0].mxu0
    %v858 = vadd.f32 %v745, %v857
    %v859 = vpop.f32.mrb[0].mxu0
    %v860 = vadd.f32 %v747, %v859
    %v861 = vpop.f32.mrb[0].mxu0
    %v862 = vadd.f32 %v749, %v861
    %863 = vmatprep.mubr.bf16.mxu0 %v301
    %864 = vmatmul.mubr.bf16.gmra.mrb[0].mxu0 %v300
    %v865 = vpop.f32.mrb[0].mxu0
    %v866 = vadd.f32 %v753, %v865
    %v867 = vpop.f32.mrb[0].mxu0
    %v868 = vadd.f32 %v755, %v867
    %v869 = vpop.f32.mrb[0].mxu0
    %v870 = vadd.f32 %v757, %v869
    %v871 = vpop.f32.mrb[0].mxu0
    %v872 = vadd.f32 %v759, %v871
    %873 = vmatprep.mubr.bf16.mxu0 %v305
    %874 = vmatmul.mubr.bf16.gmra.mrb[0].mxu0 %v304
    %v875 = vpop.f32.mrb[0].mxu0
    %v876 = vadd.f32 %v763, %v875
    %v877 = vpop.f32.mrb[0].mxu0
    %v878 = vadd.f32 %v765, %v877
    %v879 = vpop.f32.mrb[0].mxu0
    %v880 = vadd.f32 %v767, %v879
    %v881 = vpop.f32.mrb[0].mxu0
    %v882 = vadd.f32 %v769, %v881
    %883 = vdwg.mxu0
    %v884 = vmul.f32 %v806, 0.5
    %v885 = vmul.f32 %v808, 0.5
    %v886 = vmul.f32 %v810, 0.5
    %v887 = vmul.f32 %v812, 0.5
    %v888 = vmul.f32 %v816, 0.5
    %v889 = vmul.f32 %v818, 0.5
    %v890 = vmul.f32 %v820, 0.5
    %v891 = vmul.f32 %v822, 0.5
    %v892 = vmul.f32 %v826, 0.5
    %v893 = vmul.f32 %v828, 0.5
    %v894 = vmul.f32 %v830, 0.5
    %v895 = vmul.f32 %v832, 0.5
    %v896 = vmul.f32 %v836, 0.5
    %v897 = vmul.f32 %v838, 0.5
    %v898 = vmul.f32 %v840, 0.5
    %v899 = vmul.f32 %v842, 0.5
    %v900 = vmul.f32 %v846, 0.5
    %v901 = vmul.f32 %v848, 0.5
    %v902 = vmul.f32 %v850, 0.5
    %v903 = vmul.f32 %v852, 0.5
    %v904 = vmul.f32 %v856, 0.5
    %v905 = vmul.f32 %v858, 0.5
    %v906 = vmul.f32 %v860, 0.5
    %v907 = vmul.f32 %v862, 0.5
    %v908 = vmul.f32 %v866, 0.5
    %v909 = vmul.f32 %v868, 0.5
    %v910 = vmul.f32 %v870, 0.5
    %v911 = vmul.f32 %v872, 0.5
    %v912 = vmul.f32 %v876, 0.5
    %v913 = vmul.f32 %v878, 0.5
    %v914 = vmul.f32 %v880, 0.5
    %v915 = vmul.f32 %v882, 0.5
    %v916 = vmul.f32 %v806, 0.044715
    %v917 = vmul.f32 %v808, 0.044715
    %v918 = vmul.f32 %v810, 0.044715
    %v919 = vmul.f32 %v812, 0.044715
    %v920 = vmul.f32 %v816, 0.044715
    %v921 = vmul.f32 %v818, 0.044715
    %v922 = vmul.f32 %v820, 0.044715
    %v923 = vmul.f32 %v822, 0.044715
    %v924 = vmul.f32 %v826, 0.044715
    %v925 = vmul.f32 %v828, 0.044715
    %v926 = vmul.f32 %v830, 0.044715
    %v927 = vmul.f32 %v832, 0.044715
    %v928 = vmul.f32 %v836, 0.044715
    %v929 = vmul.f32 %v838, 0.044715
    %v930 = vmul.f32 %v840, 0.044715
    %v931 = vmul.f32 %v842, 0.044715
    %v932 = vmul.f32 %v846, 0.044715
    %v933 = vmul.f32 %v848, 0.044715
    %v934 = vmul.f32 %v850, 0.044715
    %v935 = vmul.f32 %v852, 0.044715
    %v936 = vmul.f32 %v856, 0.044715
    %v937 = vmul.f32 %v858, 0.044715
    %v938 = vmul.f32 %v860, 0.044715
    %v939 = vmul.f32 %v862, 0.044715
    %v940 = vmul.f32 %v866, 0.044715
    %v941 = vmul.f32 %v868, 0.044715
    %v942 = vmul.f32 %v870, 0.044715
    %v943 = vmul.f32 %v872, 0.044715
    %v944 = vmul.f32 %v876, 0.044715
    %v945 = vmul.f32 %v878, 0.044715
    %v946 = vmul.f32 %v880, 0.044715
    %v947 = vmul.f32 %v882, 0.044715
    %v948 = vmul.f32 %v916, %v806
    %v949 = vmul.f32 %v917, %v808
    %v950 = vmul.f32 %v918, %v810
    %v951 = vmul.f32 %v919, %v812
    %v952 = vmul.f32 %v920, %v816
    %v953 = vmul.f32 %v921, %v818
    %v954 = vmul.f32 %v922, %v820
    %v955 = vmul.f32 %v923, %v822
    %v956 = vmul.f32 %v924, %v826
    %v957 = vmul.f32 %v925, %v828
    %v958 = vmul.f32 %v926, %v830
    %v959 = vmul.f32 %v927, %v832
    %v960 = vmul.f32 %v928, %v836
    %v961 = vmul.f32 %v929, %v838
    %v962 = vmul.f32 %v930, %v840
    %v963 = vmul.f32 %v931, %v842
    %v964 = vmul.f32 %v932, %v846
    %v965 = vmul.f32 %v933, %v848
    %v966 = vmul.f32 %v934, %v850
    %v967 = vmul.f32 %v935, %v852
    %v968 = vmul.f32 %v936, %v856
    %v969 = vmul.f32 %v937, %v858
    %v970 = vmul.f32 %v938, %v860
    %v971 = vmul.f32 %v939, %v862
    %v972 = vmul.f32 %v940, %v866
    %v973 = vmul.f32 %v941, %v868
    %v974 = vmul.f32 %v942, %v870
    %v975 = vmul.f32 %v943, %v872
    %v976 = vmul.f32 %v944, %v876
    %v977 = vmul.f32 %v945, %v878
    %v978 = vmul.f32 %v946, %v880
    %v979 = vmul.f32 %v947, %v882
    %v980 = vmul.f32 %v948, %v806
    %v981 = vmul.f32 %v949, %v808
    %v982 = vmul.f32 %v950, %v810
    %v983 = vmul.f32 %v951, %v812
    %v984 = vmul.f32 %v952, %v816
    %v985 = vmul.f32 %v953, %v818
    %v986 = vmul.f32 %v954, %v820
    %v987 = vmul.f32 %v955, %v822
    %v988 = vmul.f32 %v956, %v826
    %v989 = vmul.f32 %v957, %v828
    %v990 = vmul.f32 %v958, %v830
    %v991 = vmul.f32 %v959, %v832
    %v992 = vmul.f32 %v960, %v836
    %v993 = vmul.f32 %v961, %v838
    %v994 = vmul.f32 %v962, %v840
    %v995 = vmul.f32 %v963, %v842
    %v996 = vmul.f32 %v964, %v846
    %v997 = vmul.f32 %v965, %v848
    %v998 = vmul.f32 %v966, %v850
    %v999 = vmul.f32 %v967, %v852
    %v1000 = vmul.f32 %v968, %v856
    %v1001 = vmul.f32 %v969, %v858
    %v1002 = vmul.f32 %v970, %v860
    %v1003 = vmul.f32 %v971, %v862
    %v1004 = vmul.f32 %v972, %v866
    %v1005 = vmul.f32 %v973, %v868
    %v1006 = vmul.f32 %v974, %v870
    %v1007 = vmul.f32 %v975, %v872
    %v1008 = vmul.f32 %v976, %v876
    %v1009 = vmul.f32 %v977, %v878
    %v1010 = vmul.f32 %v978, %v880
    %v1011 = vmul.f32 %v979, %v882
    %v1012 = vadd.f32 %v806, %v980
    %v1013 = vadd.f32 %v808, %v981
    %v1014 = vadd.f32 %v810, %v982
    %v1015 = vadd.f32 %v812, %v983
    %v1016 = vadd.f32 %v816, %v984
    %v1017 = vadd.f32 %v818, %v985
    %v1018 = vadd.f32 %v820, %v986
    %v1019 = vadd.f32 %v822, %v987
    %v1020 = vadd.f32 %v826, %v988
    %v1021 = vadd.f32 %v828, %v989
    %v1022 = vadd.f32 %v830, %v990
    %v1023 = vadd.f32 %v832, %v991
    %v1024 = vadd.f32 %v836, %v992
    %v1025 = vadd.f32 %v838, %v993
    %v1026 = vadd.f32 %v840, %v994
    %v1027 = vadd.f32 %v842, %v995
    %v1028 = vadd.f32 %v846, %v996
    %v1029 = vadd.f32 %v848, %v997
    %v1030 = vadd.f32 %v850, %v998
    %v1031 = vadd.f32 %v852, %v999
    %v1032 = vadd.f32 %v856, %v1000
    %v1033 = vadd.f32 %v858, %v1001
    %v1034 = vadd.f32 %v860, %v1002
    %v1035 = vadd.f32 %v862, %v1003
    %v1036 = vadd.f32 %v866, %v1004
    %v1037 = vadd.f32 %v868, %v1005
    %v1038 = vadd.f32 %v870, %v1006
    %v1039 = vadd.f32 %v872, %v1007
    %v1040 = vadd.f32 %v876, %v1008
    %v1041 = vadd.f32 %v878, %v1009
    %v1042 = vadd.f32 %v880, %v1010
    %v1043 = vadd.f32 %v882, %v1011
    %v1044 = vmul.f32 %v1012, 0.7978846
    %v1045 = vmul.f32 %v1013, 0.7978846
    %v1046 = vmul.f32 %v1014, 0.7978846
    %v1047 = vmul.f32 %v1015, 0.7978846
    %v1048 = vmul.f32 %v1016, 0.7978846
    %v1049 = vmul.f32 %v1017, 0.7978846
    %v1050 = vmul.f32 %v1018, 0.7978846
    %v1051 = vmul.f32 %v1019, 0.7978846
    %v1052 = vmul.f32 %v1020, 0.7978846
    %v1053 = vmul.f32 %v1021, 0.7978846
    %v1054 = vmul.f32 %v1022, 0.7978846
    %v1055 = vmul.f32 %v1023, 0.7978846
    %v1056 = vmul.f32 %v1024, 0.7978846
    %v1057 = vmul.f32 %v1025, 0.7978846
    %v1058 = vmul.f32 %v1026, 0.7978846
    %v1059 = vmul.f32 %v1027, 0.7978846
    %v1060 = vmul.f32 %v1028, 0.7978846
    %v1061 = vmul.f32 %v1029, 0.7978846
    %v1062 = vmul.f32 %v1030, 0.7978846
    %v1063 = vmul.f32 %v1031, 0.7978846
    %v1064 = vmul.f32 %v1032, 0.7978846
    %v1065 = vmul.f32 %v1033, 0.7978846
    %v1066 = vmul.f32 %v1034, 0.7978846
    %v1067 = vmul.f32 %v1035, 0.7978846
    %v1068 = vmul.f32 %v1036, 0.7978846
    %v1069 = vmul.f32 %v1037, 0.7978846
    %v1070 = vmul.f32 %v1038, 0.7978846
    %v1071 = vmul.f32 %v1039, 0.7978846
    %v1072 = vmul.f32 %v1040, 0.7978846
    %v1073 = vmul.f32 %v1041, 0.7978846
    %v1074 = vmul.f32 %v1042, 0.7978846
    %v1075 = vmul.f32 %v1043, 0.7978846
    %v1076 = vtanh.pop %v1044
    %v1077 = vtanh.pop %v1045
    %v1078 = vtanh.pop %v1046
    %v1079 = vtanh.pop %v1047
    %v1080 = vtanh.pop %v1048
    %v1081 = vtanh.pop %v1049
    %v1082 = vtanh.pop %v1050
    %v1083 = vtanh.pop %v1051
    %v1084 = vtanh.pop %v1052
    %v1085 = vtanh.pop %v1053
    %v1086 = vtanh.pop %v1054
    %v1087 = vtanh.pop %v1055
    %v1088 = vtanh.pop %v1056
    %v1089 = vtanh.pop %v1057
    %v1090 = vtanh.pop %v1058
    %v1091 = vtanh.pop %v1059
    %v1092 = vtanh.pop %v1060
    %v1093 = vtanh.pop %v1061
    %v1094 = vtanh.pop %v1062
    %v1095 = vtanh.pop %v1063
    %v1096 = vtanh.pop %v1064
    %v1097 = vtanh.pop %v1065
    %v1098 = vtanh.pop %v1066
    %v1099 = vtanh.pop %v1067
    %v1100 = vtanh.pop %v1068
    %v1101 = vtanh.pop %v1069
    %v1102 = vtanh.pop %v1070
    %v1103 = vtanh.pop %v1071
    %v1104 = vtanh.pop %v1072
    %v1105 = vtanh.pop %v1073
    %v1106 = vtanh.pop %v1074
    %v1107 = vtanh.pop %v1075
    %v1108 = vadd.f32 %v1076, 1.0
    %v1109 = vadd.f32 %v1077, 1.0
    %v1110 = vadd.f32 %v1078, 1.0
    %v1111 = vadd.f32 %v1079, 1.0
    %v1112 = vadd.f32 %v1080, 1.0
    %v1113 = vadd.f32 %v1081, 1.0
    %v1114 = vadd.f32 %v1082, 1.0
    %v1115 = vadd.f32 %v1083, 1.0
    %v1116 = vadd.f32 %v1084, 1.0
    %v1117 = vadd.f32 %v1085, 1.0
    %v1118 = vadd.f32 %v1086, 1.0
    %v1119 = vadd.f32 %v1087, 1.0
    %v1120 = vadd.f32 %v1088, 1.0
    %v1121 = vadd.f32 %v1089, 1.0
    %v1122 = vadd.f32 %v1090, 1.0
    %v1123 = vadd.f32 %v1091, 1.0
    %v1124 = vadd.f32 %v1092, 1.0
    %v1125 = vadd.f32 %v1093, 1.0
    %v1126 = vadd.f32 %v1094, 1.0
    %v1127 = vadd.f32 %v1095, 1.0
    %v1128 = vadd.f32 %v1096, 1.0
    %v1129 = vadd.f32 %v1097, 1.0
    %v1130 = vadd.f32 %v1098, 1.0
    %v1131 = vadd.f32 %v1099, 1.0
    %v1132 = vadd.f32 %v1100, 1.0
    %v1133 = vadd.f32 %v1101, 1.0
    %v1134 = vadd.f32 %v1102, 1.0
    %v1135 = vadd.f32 %v1103, 1.0
    %v1136 = vadd.f32 %v1104, 1.0
    %v1137 = vadd.f32 %v1105, 1.0
    %v1138 = vadd.f32 %v1106, 1.0
    %v1139 = vadd.f32 %v1107, 1.0
    %v1140 = vmul.f32 %v884, %v1108
    %v1141 = vmul.f32 %v885, %v1109
    %v1142 = vmul.f32 %v886, %v1110
    %v1143 = vmul.f32 %v887, %v1111
    %v1144 = vmul.f32 %v888, %v1112
    %v1145 = vmul.f32 %v889, %v1113
    %v1146 = vmul.f32 %v890, %v1114
    %v1147 = vmul.f32 %v891, %v1115
    %v1148 = vmul.f32 %v892, %v1116
    %v1149 = vmul.f32 %v893, %v1117
    %v1150 = vmul.f32 %v894, %v1118
    %v1151 = vmul.f32 %v895, %v1119
    %v1152 = vmul.f32 %v896, %v1120
    %v1153 = vmul.f32 %v897, %v1121
    %v1154 = vmul.f32 %v898, %v1122
    %v1155 = vmul.f32 %v899, %v1123
    %v1156 = vmul.f32 %v900, %v1124
    %v1157 = vmul.f32 %v901, %v1125
    %v1158 = vmul.f32 %v902, %v1126
    %v1159 = vmul.f32 %v903, %v1127
    %v1160 = vmul.f32 %v904, %v1128
    %v1161 = vmul.f32 %v905, %v1129
    %v1162 = vmul.f32 %v906, %v1130
    %v1163 = vmul.f32 %v907, %v1131
    %v1164 = vmul.f32 %v908, %v1132
    %v1165 = vmul.f32 %v909, %v1133
    %v1166 = vmul.f32 %v910, %v1134
    %v1167 = vmul.f32 %v911, %v1135
    %v1168 = vmul.f32 %v912, %v1136
    %v1169 = vmul.f32 %v913, %v1137
    %v1170 = vmul.f32 %v914, %v1138
    %v1171 = vmul.f32 %v915, %v1139
    %v1172 = vpack.c.bf16 %v1142, %v1140
    %v1173 = vpack.c.bf16 %v1143, %v1141
    %v1174 = vpack.c.bf16 %v1146, %v1144
    %v1175 = vpack.c.bf16 %v1147, %v1145
    %v1176 = vpack.c.bf16 %v1150, %v1148
    %v1177 = vpack.c.bf16 %v1151, %v1149
    %v1178 = vpack.c.bf16 %v1154, %v1152
    %v1179 = vpack.c.bf16 %v1155, %v1153
    %v1180 = vpack.c.bf16 %v1158, %v1156
    %v1181 = vpack.c.bf16 %v1159, %v1157
    %v1182 = vpack.c.bf16 %v1162, %v1160
    %v1183 = vpack.c.bf16 %v1163, %v1161
    %v1184 = vpack.c.bf16 %v1166, %v1164
    %v1185 = vpack.c.bf16 %v1167, %v1165
    %v1186 = vpack.c.bf16 %v1170, %v1168
    %v1187 = vpack.c.bf16 %v1171, %v1169
    %v1188 = vld [vmem:[#allocation8] sm:$0xf]
    %v1189 = vld [vmem:[#allocation8 + $0x4] sm:$0xf]
    %v1190 = vld [vmem:[#allocation8 + $0x8] sm:$0xf]
    %v1191 = vld [vmem:[#allocation8 + $0xc] sm:$0xf]
    %v1192 = vld [vmem:[#allocation8 + $0x10] sm:$0xf]
    %v1193 = vld [vmem:[#allocation8 + $0x14] sm:$0xf]
    %v1194 = vld [vmem:[#allocation8 + $0x18] sm:$0xf]
    %v1195 = vld [vmem:[#allocation8 + $0x1c] sm:$0xf]
    %v1196 = vld [vmem:[#allocation8 + $0x20] sm:$0xf]
    %v1197 = vld [vmem:[#allocation8 + $0x24] sm:$0xf]
    %v1198 = vld [vmem:[#allocation8 + $0x28] sm:$0xf]
    %v1199 = vld [vmem:[#allocation8 + $0x2c] sm:$0xf]
    %v1200 = vld [vmem:[#allocation8 + $0x30] sm:$0xf]
    %v1201 = vld [vmem:[#allocation8 + $0x34] sm:$0xf]
    %v1202 = vld [vmem:[#allocation8 + $0x38] sm:$0xf]
    %v1203 = vld [vmem:[#allocation8 + $0x3c] sm:$0xf]
    %v1204 = vld [vmem:[#allocation8 + $0x40] sm:$0xf]
    %v1205 = vld [vmem:[#allocation8 + $0x44] sm:$0xf]
    %v1206 = vld [vmem:[#allocation8 + $0x48] sm:$0xf]
    %v1207 = vld [vmem:[#allocation8 + $0x4c] sm:$0xf]
    %v1208 = vld [vmem:[#allocation8 + $0x50] sm:$0xf]
    %v1209 = vld [vmem:[#allocation8 + $0x54] sm:$0xf]
    %v1210 = vld [vmem:[#allocation8 + $0x58] sm:$0xf]
    %v1211 = vld [vmem:[#allocation8 + $0x5c] sm:$0xf]
    %v1212 = vld [vmem:[#allocation8 + $0x60] sm:$0xf]
    %v1213 = vld [vmem:[#allocation8 + $0x64] sm:$0xf]
    %v1214 = vld [vmem:[#allocation8 + $0x68] sm:$0xf]
    %v1215 = vld [vmem:[#allocation8 + $0x6c] sm:$0xf]
    %v1216 = vld [vmem:[#allocation8 + $0x70] sm:$0xf]
    %v1217 = vld [vmem:[#allocation8 + $0x74] sm:$0xf]
    %v1218 = vld [vmem:[#allocation8 + $0x78] sm:$0xf]
    %v1219 = vld [vmem:[#allocation8 + $0x7c] sm:$0xf]
    %v1220 = vld [vmem:[%s4] sm:$0x1]
    %v1222 = vlaneseq
    %v1223 = vshrl.u32 %v1222, 7
    %v1224 = vsub.s32 0, %v1223
    %v1225 = vrot.slane %v1220, %v1224
    %v1259 = vunpack.c.l.b16 %v1188
    %v1260 = vunpack.c.l.b16 %v1189
    %v1261 = vunpack.c.l.b16 %v1190
    %v1262 = vunpack.c.l.b16 %v1191
    %v1263 = vunpack.c.l.b16 %v1192
    %v1264 = vunpack.c.l.b16 %v1193
    %v1265 = vunpack.c.l.b16 %v1194
    %v1266 = vunpack.c.l.b16 %v1195
    %v1267 = vunpack.c.l.b16 %v1196
    %v1268 = vunpack.c.l.b16 %v1197
    %v1269 = vunpack.c.l.b16 %v1198
    %v1270 = vunpack.c.l.b16 %v1199
    %v1271 = vunpack.c.l.b16 %v1200
    %v1272 = vunpack.c.l.b16 %v1201
    %v1273 = vunpack.c.l.b16 %v1202
    %v1274 = vunpack.c.l.b16 %v1203
    %v1275 = vunpack.c.l.b16 %v1204
    %v1276 = vunpack.c.l.b16 %v1205
    %v1277 = vunpack.c.l.b16 %v1206
    %v1278 = vunpack.c.l.b16 %v1207
    %v1279 = vunpack.c.l.b16 %v1208
    %v1280 = vunpack.c.l.b16 %v1209
    %v1281 = vunpack.c.l.b16 %v1210
    %v1282 = vunpack.c.l.b16 %v1211
    %v1283 = vunpack.c.l.b16 %v1212
    %v1284 = vunpack.c.l.b16 %v1213
    %v1285 = vunpack.c.l.b16 %v1214
    %v1286 = vunpack.c.l.b16 %v1215
    %v1287 = vunpack.c.l.b16 %v1216
    %v1288 = vunpack.c.l.b16 %v1217
    %v1289 = vunpack.c.l.b16 %v1218
    %v1290 = vunpack.c.l.b16 %v1219
    %v1291 = vpack.c.b16 %v1260, %v1259
    %v1292 = vpack.c.b16 %v1262, %v1261
    %v1293 = vpack.c.b16 %v1264, %v1263
    %v1294 = vpack.c.b16 %v1266, %v1265
    %v1295 = vpack.c.b16 %v1268, %v1267
    %v1296 = vpack.c.b16 %v1270, %v1269
    %v1297 = vpack.c.b16 %v1272, %v1271
    %v1298 = vpack.c.b16 %v1274, %v1273
    %v1299 = vpack.c.b16 %v1276, %v1275
    %v1300 = vpack.c.b16 %v1278, %v1277
    %v1301 = vpack.c.b16 %v1280, %v1279
    %v1302 = vpack.c.b16 %v1282, %v1281
    %v1303 = vpack.c.b16 %v1284, %v1283
    %v1304 = vpack.c.b16 %v1286, %v1285
    %v1305 = vpack.c.b16 %v1288, %v1287
    %v1306 = vpack.c.b16 %v1290, %v1289
    %1323 = vmatprep.subr.bf16.mxu0 0
    %1324 = vmatpush1.bf16.msra.mxu0 %v1291
    %1325 = vmatprep.subr.bf16.mxu0 0
    %1326 = vmatpush1.bf16.msra.mxu0 %v1292
    %1327 = vmatprep.subr.bf16.mxu0 0
    %1328 = vmatpush1.bf16.msra.mxu0 %v1293
    %1329 = vmatprep.subr.bf16.mxu0 0
    %1330 = vmatpush1.bf16.msra.mxu0 %v1294
    %1331 = vmatprep.subr.bf16.mxu0 0
    %1332 = vmatpush1.bf16.msra.mxu0 %v1295
    %1333 = vmatprep.subr.bf16.mxu0 0
    %1334 = vmatpush1.bf16.msra.mxu0 %v1296
    %1335 = vmatprep.subr.bf16.mxu0 0
    %1336 = vmatpush1.bf16.msra.mxu0 %v1297
    %1337 = vmatprep.subr.bf16.mxu0 0
    %1338 = vmatpush1.bf16.msra.mxu0 %v1298
    %1339 = vmatprep.subr.bf16.mxu0 0
    %1340 = vmatpush1.bf16.msra.mxu0 %v1299
    %1341 = vmatprep.subr.bf16.mxu0 0
    %1342 = vmatpush1.bf16.msra.mxu0 %v1300
    %1343 = vmatprep.subr.bf16.mxu0 0
    %1344 = vmatpush1.bf16.msra.mxu0 %v1301
    %1345 = vmatprep.subr.bf16.mxu0 0
    %1346 = vmatpush1.bf16.msra.mxu0 %v1302
    %1347 = vmatprep.subr.bf16.mxu0 0
    %1348 = vmatpush1.bf16.msra.mxu0 %v1303
    %1349 = vmatprep.subr.bf16.mxu0 0
    %1350 = vmatpush1.bf16.msra.mxu0 %v1304
    %1351 = vmatprep.subr.bf16.mxu0 0
    %1352 = vmatpush1.bf16.msra.mxu0 %v1305
    %1353 = vmatprep.subr.bf16.mxu0 0
    %1354 = vmatpush1.bf16.msra.mxu0 %v1306
    %1355 = vmatprep.mubr.bf16.mxu0 %v1173
    %1356 = vmatmul.mubr.bf16.gmra.mrb[0].mxu0 %v1172
    %v1357 = vpop.f32.mrb[0].mxu0
    %v1358 = vadd.f32 %v1225, %v1357
    %v1359 = vpop.f32.mrb[0].mxu0
    %v1360 = vpop.f32.mrb[0].mxu0
    %v1361 = vadd.f32 %v1225, %v1360
    %v1362 = vpop.f32.mrb[0].mxu0
    %1363 = vmatprep.mubr.bf16.mxu0 %v1175
    %1364 = vmatmul.mubr.bf16.gmra.mrb[0].mxu0 %v1174
    %v1365 = vpop.f32.mrb[0].mxu0
    %v1366 = vadd.f32 %v1225, %v1365
    %v1367 = vpop.f32.mrb[0].mxu0
    %v1368 = vpop.f32.mrb[0].mxu0
    %v1369 = vadd.f32 %v1225, %v1368
    %v1370 = vpop.f32.mrb[0].mxu0
    %1371 = vmatprep.mubr.bf16.mxu0 %v1177
    %1372 = vmatmul.mubr.bf16.gmra.mrb[0].mxu0 %v1176
    %v1373 = vpop.f32.mrb[0].mxu0
    %v1374 = vadd.f32 %v1225, %v1373
    %v1375 = vpop.f32.mrb[0].mxu0
    %v1376 = vpop.f32.mrb[0].mxu0
    %v1377 = vadd.f32 %v1225, %v1376
    %v1378 = vpop.f32.mrb[0].mxu0
    %1379 = vmatprep.mubr.bf16.mxu0 %v1179
    %1380 = vmatmul.mubr.bf16.gmra.mrb[0].mxu0 %v1178
    %v1381 = vpop.f32.mrb[0].mxu0
    %v1382 = vadd.f32 %v1225, %v1381
    %v1383 = vpop.f32.mrb[0].mxu0
    %v1384 = vpop.f32.mrb[0].mxu0
    %v1385 = vadd.f32 %v1225, %v1384
    %v1386 = vpop.f32.mrb[0].mxu0
    %1387 = vmatprep.mubr.bf16.mxu0 %v1181
    %1388 = vmatmul.mubr.bf16.gmra.mrb[0].mxu0 %v1180
    %v1389 = vpop.f32.mrb[0].mxu0
    %v1390 = vadd.f32 %v1225, %v1389
    %v1391 = vpop.f32.mrb[0].mxu0
    %v1392 = vpop.f32.mrb[0].mxu0
    %v1393 = vadd.f32 %v1225, %v1392
    %v1394 = vpop.f32.mrb[0].mxu0
    %1395 = vmatprep.mubr.bf16.mxu0 %v1183
    %1396 = vmatmul.mubr.bf16.gmra.mrb[0].mxu0 %v1182
    %v1397 = vpop.f32.mrb[0].mxu0
    %v1398 = vadd.f32 %v1225, %v1397
    %v1399 = vpop.f32.mrb[0].mxu0
    %v1400 = vpop.f32.mrb[0].mxu0
    %v1401 = vadd.f32 %v1225, %v1400
    %v1402 = vpop.f32.mrb[0].mxu0
    %1403 = vmatprep.mubr.bf16.mxu0 %v1185
    %1404 = vmatmul.mubr.bf16.gmra.mrb[0].mxu0 %v1184
    %v1405 = vpop.f32.mrb[0].mxu0
    %v1406 = vadd.f32 %v1225, %v1405
    %v1407 = vpop.f32.mrb[0].mxu0
    %v1408 = vpop.f32.mrb[0].mxu0
    %v1409 = vadd.f32 %v1225, %v1408
    %v1410 = vpop.f32.mrb[0].mxu0
    %1411 = vmatprep.mubr.bf16.mxu0 %v1187
    %1412 = vmatmul.mubr.bf16.gmra.mrb[0].mxu0 %v1186
    %v1413 = vpop.f32.mrb[0].mxu0
    %v1414 = vadd.f32 %v1225, %v1413
    %v1415 = vpop.f32.mrb[0].mxu0
    %v1416 = vpop.f32.mrb[0].mxu0
    %v1417 = vadd.f32 %v1225, %v1416
    %v1418 = vpop.f32.mrb[0].mxu0
    %1419 = vdwg.mxu0
    %v1420 = vmul.f32 %v1358, 0.5
    %v1421 = vmul.f32 %v1361, 0.5
    %v1422 = vmul.f32 %v1366, 0.5
    %v1423 = vmul.f32 %v1369, 0.5
    %v1424 = vmul.f32 %v1374, 0.5
    %v1425 = vmul.f32 %v1377, 0.5
    %v1426 = vmul.f32 %v1382, 0.5
    %v1427 = vmul.f32 %v1385, 0.5
    %v1428 = vmul.f32 %v1390, 0.5
    %v1429 = vmul.f32 %v1393, 0.5
    %v1430 = vmul.f32 %v1398, 0.5
    %v1431 = vmul.f32 %v1401, 0.5
    %v1432 = vmul.f32 %v1406, 0.5
    %v1433 = vmul.f32 %v1409, 0.5
    %v1434 = vmul.f32 %v1414, 0.5
    %v1435 = vmul.f32 %v1417, 0.5
    %v1436 = vmul.f32 %v1358, 0.044715
    %v1437 = vmul.f32 %v1361, 0.044715
    %v1438 = vmul.f32 %v1366, 0.044715
    %v1439 = vmul.f32 %v1369, 0.044715
    %v1440 = vmul.f32 %v1374, 0.044715
    %v1441 = vmul.f32 %v1377, 0.044715
    %v1442 = vmul.f32 %v1382, 0.044715
    %v1443 = vmul.f32 %v1385, 0.044715
    %v1444 = vmul.f32 %v1390, 0.044715
    %v1445 = vmul.f32 %v1393, 0.044715
    %v1446 = vmul.f32 %v1398, 0.044715
    %v1447 = vmul.f32 %v1401, 0.044715
    %v1448 = vmul.f32 %v1406, 0.044715
    %v1449 = vmul.f32 %v1409, 0.044715
    %v1450 = vmul.f32 %v1414, 0.044715
    %v1451 = vmul.f32 %v1417, 0.044715
    %v1452 = vmul.f32 %v1436, %v1358
    %v1453 = vmul.f32 %v1437, %v1361
    %v1454 = vmul.f32 %v1438, %v1366
    %v1455 = vmul.f32 %v1439, %v1369
    %v1456 = vmul.f32 %v1440, %v1374
    %v1457 = vmul.f32 %v1441, %v1377
    %v1458 = vmul.f32 %v1442, %v1382
    %v1459 = vmul.f32 %v1443, %v1385
    %v1460 = vmul.f32 %v1444, %v1390
    %v1461 = vmul.f32 %v1445, %v1393
    %v1462 = vmul.f32 %v1446, %v1398
    %v1463 = vmul.f32 %v1447, %v1401
    %v1464 = vmul.f32 %v1448, %v1406
    %v1465 = vmul.f32 %v1449, %v1409
    %v1466 = vmul.f32 %v1450, %v1414
    %v1467 = vmul.f32 %v1451, %v1417
    %v1468 = vmul.f32 %v1452, %v1358
    %v1469 = vmul.f32 %v1453, %v1361
    %v1470 = vmul.f32 %v1454, %v1366
    %v1471 = vmul.f32 %v1455, %v1369
    %v1472 = vmul.f32 %v1456, %v1374
    %v1473 = vmul.f32 %v1457, %v1377
    %v1474 = vmul.f32 %v1458, %v1382
    %v1475 = vmul.f32 %v1459, %v1385
    %v1476 = vmul.f32 %v1460, %v1390
    %v1477 = vmul.f32 %v1461, %v1393
    %v1478 = vmul.f32 %v1462, %v1398
    %v1479 = vmul.f32 %v1463, %v1401
    %v1480 = vmul.f32 %v1464, %v1406
    %v1481 = vmul.f32 %v1465, %v1409
    %v1482 = vmul.f32 %v1466, %v1414
    %v1483 = vmul.f32 %v1467, %v1417
    %v1484 = vadd.f32 %v1358, %v1468
    %v1485 = vadd.f32 %v1361, %v1469
    %v1486 = vadd.f32 %v1366, %v1470
    %v1487 = vadd.f32 %v1369, %v1471
    %v1488 = vadd.f32 %v1374, %v1472
    %v1489 = vadd.f32 %v1377, %v1473
    %v1490 = vadd.f32 %v1382, %v1474
    %v1491 = vadd.f32 %v1385, %v1475
    %v1492 = vadd.f32 %v1390, %v1476
    %v1493 = vadd.f32 %v1393, %v1477
    %v1494 = vadd.f32 %v1398, %v1478
    %v1495 = vadd.f32 %v1401, %v1479
    %v1496 = vadd.f32 %v1406, %v1480
    %v1497 = vadd.f32 %v1409, %v1481
    %v1498 = vadd.f32 %v1414, %v1482
    %v1499 = vadd.f32 %v1417, %v1483
    %v1500 = vmul.f32 %v1484, 0.7978846
    %v1501 = vmul.f32 %v1485, 0.7978846
    %v1502 = vmul.f32 %v1486, 0.7978846
    %v1503 = vmul.f32 %v1487, 0.7978846
    %v1504 = vmul.f32 %v1488, 0.7978846
    %v1505 = vmul.f32 %v1489, 0.7978846
    %v1506 = vmul.f32 %v1490, 0.7978846
    %v1507 = vmul.f32 %v1491, 0.7978846
    %v1508 = vmul.f32 %v1492, 0.7978846
    %v1509 = vmul.f32 %v1493, 0.7978846
    %v1510 = vmul.f32 %v1494, 0.7978846
    %v1511 = vmul.f32 %v1495, 0.7978846
    %v1512 = vmul.f32 %v1496, 0.7978846
    %v1513 = vmul.f32 %v1497, 0.7978846
    %v1514 = vmul.f32 %v1498, 0.7978846
    %v1515 = vmul.f32 %v1499, 0.7978846
    %v1516 = vtanh.pop %v1500
    %v1517 = vtanh.pop %v1501
    %v1518 = vtanh.pop %v1502
    %v1519 = vtanh.pop %v1503
    %v1520 = vtanh.pop %v1504
    %v1521 = vtanh.pop %v1505
    %v1522 = vtanh.pop %v1506
    %v1523 = vtanh.pop %v1507
    %v1524 = vtanh.pop %v1508
    %v1525 = vtanh.pop %v1509
    %v1526 = vtanh.pop %v1510
    %v1527 = vtanh.pop %v1511
    %v1528 = vtanh.pop %v1512
    %v1529 = vtanh.pop %v1513
    %v1530 = vtanh.pop %v1514
    %v1531 = vtanh.pop %v1515
    %v1532 = vadd.f32 %v1516, 1.0
    %v1533 = vadd.f32 %v1517, 1.0
    %v1534 = vadd.f32 %v1518, 1.0
    %v1535 = vadd.f32 %v1519, 1.0
    %v1536 = vadd.f32 %v1520, 1.0
    %v1537 = vadd.f32 %v1521, 1.0
    %v1538 = vadd.f32 %v1522, 1.0
    %v1539 = vadd.f32 %v1523, 1.0
    %v1540 = vadd.f32 %v1524, 1.0
    %v1541 = vadd.f32 %v1525, 1.0
    %v1542 = vadd.f32 %v1526, 1.0
    %v1543 = vadd.f32 %v1527, 1.0
    %v1544 = vadd.f32 %v1528, 1.0
    %v1545 = vadd.f32 %v1529, 1.0
    %v1546 = vadd.f32 %v1530, 1.0
    %v1547 = vadd.f32 %v1531, 1.0
    %v1548 = vmul.f32 %v1420, %v1532
    %v1549 = vmul.f32 %v1421, %v1533
    %v1550 = vmul.f32 %v1422, %v1534
    %v1551 = vmul.f32 %v1423, %v1535
    %v1552 = vmul.f32 %v1424, %v1536
    %v1553 = vmul.f32 %v1425, %v1537
    %v1554 = vmul.f32 %v1426, %v1538
    %v1555 = vmul.f32 %v1427, %v1539
    %v1556 = vmul.f32 %v1428, %v1540
    %v1557 = vmul.f32 %v1429, %v1541
    %v1558 = vmul.f32 %v1430, %v1542
    %v1559 = vmul.f32 %v1431, %v1543
    %v1560 = vmul.f32 %v1432, %v1544
    %v1561 = vmul.f32 %v1433, %v1545
    %v1562 = vmul.f32 %v1434, %v1546
    %v1563 = vmul.f32 %v1435, %v1547
    %v1564 = vld [vmem:[%s5] sm:$0x1]
    %s1565 = sld [smem:[#allocation2]]
    %v1566 = vstv %s1565
    %1567 = vmatprep.subr.mxu0 0.0
    %1568 = vmatpush1.xpose.msra.mxu0 %v1548
    %1569 = vmatprep.subr.mxu0 0.0
    %1570 = vmatpush1.xpose.msra.mxu0 %v1549
    %1571 = vmatprep.subr.mxu0 0.0
    %1572 = vmatpush1.xpose.msra.mxu0 %v1550
    %1573 = vmatprep.subr.mxu0 0.0
    %1574 = vmatpush1.xpose.msra.mxu0 %v1551
    %1575 = vmatprep.subr.mxu0 0.0
    %1576 = vmatpush1.xpose.msra.mxu0 %v1552
    %1577 = vmatprep.subr.mxu0 0.0
    %1578 = vmatpush1.xpose.msra.mxu0 %v1553
    %1579 = vmatprep.subr.mxu0 0.0
    %1580 = vmatpush1.xpose.msra.mxu0 %v1554
    %1581 = vmatprep.subr.mxu0 0.0
    %1582 = vmatpush1.xpose.msra.mxu0 %v1555
    %1583 = vmatprep.subr.mxu0 0.0
    %1584 = vmatpush1.xpose.msra.mxu0 %v1556
    %1585 = vmatprep.subr.mxu0 0.0
    %1586 = vmatpush1.xpose.msra.mxu0 %v1557
    %1587 = vmatprep.subr.mxu0 0.0
    %1588 = vmatpush1.xpose.msra.mxu0 %v1558
    %1589 = vmatprep.subr.mxu0 0.0
    %1590 = vmatpush1.xpose.msra.mxu0 %v1559
    %1591 = vmatprep.subr.mxu0 0.0
    %1592 = vmatpush1.xpose.msra.mxu0 %v1560
    %1593 = vmatprep.subr.mxu0 0.0
    %1594 = vmatpush1.xpose.msra.mxu0 %v1561
    %1595 = vmatprep.subr.mxu0 0.0
    %1596 = vmatpush1.xpose.msra.mxu0 %v1562
    %1597 = vmatprep.subr.mxu0 0.0
    %1598 = vmatpush1.xpose.msra.mxu0 %v1563
    %1599 = vmatprep.subr.mxu0 0.0
    %1600 = vmatpush1.xpose.msra.mxu0 0.0
    %1601 = vmatprep.subr.mxu0 0.0
    %1602 = vmatpush1.xpose.msra.mxu0 0.0
    %1603 = vmatprep.subr.mxu0 0.0
    %1604 = vmatpush1.xpose.msra.mxu0 0.0
    %1605 = vmatprep.subr.mxu0 0.0
    %1606 = vmatpush1.xpose.msra.mxu0 0.0
    %1607 = vmatprep.subr.mxu0 0.0
    %1608 = vmatpush1.xpose.msra.mxu0 0.0
    %1609 = vmatprep.subr.mxu0 0.0
    %1610 = vmatpush1.xpose.msra.mxu0 0.0
    %1611 = vmatprep.subr.mxu0 0.0
    %1612 = vmatpush1.xpose.msra.mxu0 0.0
    %1613 = vmatprep.subr.mxu0 0.0
    %1614 = vmatpush1.xpose.msra.mxu0 0.0
    %1615 = vmatprep.subr.mxu0 0.0
    %1616 = vmatpush1.xpose.msra.mxu0 0.0
    %1617 = vmatprep.subr.mxu0 0.0
    %1618 = vmatpush1.xpose.msra.mxu0 0.0
    %1619 = vmatprep.subr.mxu0 0.0
    %1620 = vmatpush1.xpose.msra.mxu0 0.0
    %1621 = vmatprep.subr.mxu0 0.0
    %1622 = vmatpush1.xpose.msra.mxu0 0.0
    %1623 = vmatprep.subr.mxu0 0.0
    %1624 = vmatpush1.xpose.msra.mxu0 0.0
    %1625 = vmatprep.subr.mxu0 0.0
    %1626 = vmatpush1.xpose.msra.mxu0 0.0
    %1627 = vmatprep.subr.mxu0 0.0
    %1628 = vmatpush1.xpose.msra.mxu0 0.0
    %1629 = vmatprep.subr.mxu0 0.0
    %1630 = vmatpush1.xpose.msra.mxu0 0.0
    %1631 = vmatprep.mubr.f32.mxu0 0.0
    %1632 = vmatmul.mubr.f32.gmra.mrb[0].mxu0 %v1564
    %v1633 = vpop.f32.mrb[0].mxu0
    %v1634 = vadd.f32 %v1566, %v1633
    %v1635 = vpop.f32.mrb[0].mxu0
    %1636 = vdwg.mxu0
    %1637 = vst [vmem:[#allocation9] sm:$0x1] %v1634
    // Predicated region
    $region42: #{tpu_custom_call.1} parent=1 // pred_check
      _
    $region43: #{tpu_custom_call.1} parent=1 // pred_check_branch
      %1639 = sbr.rel (0) target = $region45
    $region44: #{tpu_custom_call.1} parent=1 // pred_region
      %s1641 = ssub.s32 16, 16
      %1642 = vsyncadd [#allocation5], %s1641
      %s1644 = sshll.u32 [#allocation9], 4
      %s1645 = int_to_ptr.vmem [resolvable:$true] %s1644
      %1647 = dma.vmem_to_hbm [thread:$0]  %s1645, 16, %s7, [#allocation5]
    $region45: #{tpu_custom_call.1} parent=1 // pred_fallthru
      _
    // Predicated region
    $region46: #{tpu_custom_call.1} parent=1 // pred_check
      _
    $region47: #{tpu_custom_call.1} parent=1 // pred_check_branch
      %1649 = sbr.rel (0) target = $region49
    $region48: #{tpu_custom_call.1} parent=1 // pred_region
      %1650 = dma.done [#allocation5], 16
    $region49: #{tpu_custom_call.1} parent=1 // pred_fallthru
      _
    %1651 = vsyncpa [#allocation4], 1
    %1652 = vsyncpa [#allocation7], 1
    %1653 = vsyncpa [#allocation5], 1

</llo_original>
